<compile_context>
chip_gen: v7x
topology: tpu7x:2x2x1
jax: 0.10.0
libtpu: 0.0.40
codegen_flags: <defaults>
</compile_context>

<pallas_src>
import functools

import jax
import jax.numpy as jnp
from jax.experimental import pallas as pl
from jax.experimental.pallas import tpu as pltpu


# 3x3 taps in (dy, dx) order; im2col weights/masks are packed in the same order.
_TAPS = tuple((dy, dx) for dy in range(3) for dx in range(3))


def _hbcnn_kernel(*refs, shifts, c_pad, num_layers):
    """refs = (x, masks, w1, b1, ..., w5, b5, out, patch_scratch).

    x:      (1, c_pad, L)     f32   lane-dense slab of b_blk images
    masks:  (9*c_pad, L)      f32   0/1 boundary masks, one row-block per tap
    w_i:    (c_pad, 9*c_pad)  bf16  im2col weight (col = tap*c_pad + in_ch)
    b_i:    (c_pad, 1)        f32
    out:    (1, c_pad, L)     f32
    patch:  (9*c_pad, L)      bf16  VMEM scratch im2col patch
    """
    x_ref, mask_ref = refs[0], refs[1]
    o_ref, patch_ref = refs[-2], refs[-1]
    param_refs = refs[2:-2]

    act = x_ref[0].astype(jnp.float32)                       # (c_pad, L)
    for li in range(num_layers):
        w_ref = param_refs[2 * li]
        b_ref = param_refs[2 * li + 1]

        # Build the im2col patch tap-by-tap straight into VMEM scratch: each
        # masked tap dies right after its store (no 9-piece concat, no spills).
        for t, s in enumerate(shifts):
            if s == 0:
                piece = act                                  # centre tap: no shift, all valid
            else:
                shifted = jnp.roll(act, -s, axis=1)          # out[:, p] = act[:, p + s]
                piece = shifted * mask_ref[t * c_pad:(t + 1) * c_pad, :]
            patch_ref[t * c_pad:(t + 1) * c_pad, :] = piece.astype(patch_ref.dtype)

        # One fat MXU matmul per layer: (c_pad, 9*c_pad) x (9*c_pad, L).
        acc = jnp.dot(w_ref[...], patch_ref[...],
                      preferred_element_type=jnp.float32)
        acc = acc + b_ref[...]                               # lane-broadcast bias
        act = jnp.maximum(acc, 0.0) if li < num_layers - 1 else acc

    o_ref[...] = act[None].astype(o_ref.dtype)               # (1, c_pad, L)


def _build_masks(H, W, b_blk, c_pad):
    """(9*c_pad, b_blk*H*W) f32 0/1 masks implementing SAME zero padding,
    tiled per image so batch folding never mixes pixels across images."""
    pos = jnp.arange(H * W)
    yy, xx = pos // W, pos % W
    chunks = []
    for dy, dx in _TAPS:
        sy, sx = yy + (dy - 1), xx + (dx - 1)
        m = ((sy >= 0) & (sy < H) & (sx >= 0) & (sx < W)).astype(jnp.float32)
        m = jnp.tile(m, b_blk)                                # (b_blk*HW,)
        chunks.append(jnp.broadcast_to(m[None, :], (c_pad, b_blk * H * W)))
    return jnp.concatenate(chunks, axis=0)                    # (9*c_pad, L)


def hbcnn_forward(x_nchw, params):
    """Matches HBCNN.forward; input/output are NCHW like the PyTorch module."""
    N, Cin, H, W = x_nchw.shape
    HW = H * W
    Out = params[-1][1].shape[0]
    num_layers = len(params)

    # Common padded channel count (multiple of 16 = bf16 sublane tile) for all
    # layers -> every tap store / matmul / output store is tile aligned.
    max_c = max([Cin] + [w.shape[3] for (w, _) in params])
    c_pad = max(16, -(-max_c // 16) * 16)

    # Batch folding: 2 parallel grid steps for even N (one per v7x TensorCore,
    # near-free extra step on single-core v5e/v6e); each step sees b_blk images
    # folded into the lane axis.
    num_blocks = 2 if (N >= 2 and N % 2 == 0) else N
    b_blk = N // num_blocks
    lanes = b_blk * HW

    # Lane-dense input slab: (num_blocks, c_pad, b_blk*HW).
    x_f = x_nchw.reshape(num_blocks, b_blk, Cin, HW).astype(jnp.float32)
    x_f = jnp.transpose(x_f, (0, 2, 1, 3)).reshape(num_blocks, Cin, lanes)
    x_f = jnp.pad(x_f, ((0, 0), (0, c_pad - Cin), (0, 0)))

    masks = _build_masks(H, W, b_blk, c_pad)

    args = [x_f, masks]
    in_specs = [
        pl.BlockSpec((1, c_pad, lanes), lambda n: (n, 0, 0)),
        pl.BlockSpec((9 * c_pad, lanes), lambda n: (0, 0)),
    ]
    for w, b in params:                                       # w: (3,3,cin,cout) HWIO
        kcin, kcout = w.shape[2], w.shape[3]
        w_p = jnp.pad(w, ((0, 0), (0, 0), (0, c_pad - kcin), (0, c_pad - kcout)))
        # im2col weight: column index = tap*c_pad + cin, matching the patch layout.
        w_mat = jnp.transpose(w_p, (3, 0, 1, 2)).reshape(c_pad, 9 * c_pad)
        w_mat = w_mat.astype(jnp.bfloat16)                    # MXU-native operands
        b_col = jnp.pad(b, (0, c_pad - kcout)).reshape(c_pad, 1).astype(jnp.float32)
        args += [w_mat, b_col]
        in_specs += [pl.BlockSpec((c_pad, 9 * c_pad), lambda n: (0, 0)),
                     pl.BlockSpec((c_pad, 1), lambda n: (0, 0))]

    shifts = tuple((dy - 1) * W + (dx - 1) for dy, dx in _TAPS)
    kernel = functools.partial(_hbcnn_kernel, shifts=shifts, c_pad=c_pad,
                               num_layers=num_layers)

    out = pl.pallas_call(
        kernel,
        out_shape=jax.ShapeDtypeStruct((num_blocks, c_pad, lanes), x_nchw.dtype),
        grid_spec=pltpu.PrefetchScalarGridSpec(
            num_scalar_prefetch=0,
            grid=(num_blocks,),
            in_specs=in_specs,
            out_specs=pl.BlockSpec((1, c_pad, lanes), lambda n: (n, 0, 0)),
            scratch_shapes=[pltpu.VMEM((9 * c_pad, lanes), jnp.bfloat16)],
        ),
        compiler_params=pltpu.CompilerParams(
            dimension_semantics=("parallel",),
            vmem_limit_bytes=32 * 1024 * 1024),
    )(*args)

    # (num_blocks, c_pad, b_blk*HW) -> (N, Out, H, W); padded channels dropped.
    out = out.reshape(num_blocks, c_pad, b_blk, HW)
    out = jnp.transpose(out, (0, 2, 1, 3)).reshape(N, c_pad, H, W)
    return out[:, :Out]


def init_hbcnn_params(key, In, Out, channel1, channel2, channel3):
    """Deterministic synthetic weights matching the PyTorch module's shapes (HWIO)."""
    dims = [(In, channel1), (channel1, channel2), (channel2, channel2),
            (channel2, channel3), (channel3, Out)]
    params = []
    for i, (cin, cout) in enumerate(dims):
        kw, kb = jax.random.split(jax.random.fold_in(key, i))
        fan_in = cin * 9
        bound = 1.0 / jnp.sqrt(fan_in)
        w = jax.random.uniform(kw, (3, 3, cin, cout), jnp.float32,
                               minval=-bound, maxval=bound)
        b = jax.random.uniform(kb, (cout,), jnp.float32,
                               minval=-bound, maxval=bound)
        params.append((w, b))
    return params


def hbcnn_reference(x_nchw, params):
    """Pure-JAX reference (lax conv) for correctness check."""
    x = x_nchw
    n_layers = len(params)
    for i, (w, b) in enumerate(params):
        y = jax.lax.conv_general_dilated(
            x, w, window_strides=(1, 1), padding="SAME",
            dimension_numbers=("NCHW", "HWIO", "NCHW"))
        y = y + b[None, :, None, None]
        x = jnp.maximum(y, 0.0) if i < n_layers - 1 else y
    return x


if __name__ == "__main__":
    key = jax.random.PRNGKey(0)
    k_x, k_p = jax.random.split(key)

    # Small shapes consistent with the module: In=4, Out=2, 16x16 spatial.
    N, In, H, W = 2, 4, 16, 16
    hb_params = {"channel1": 8, "channel2": 16, "channel3": 8}
    Out = 2

    x = jax.random.normal(k_x, (N, In, H, W), jnp.float32)
    params = init_hbcnn_params(k_p, In, Out, **hb_params)

    fwd = jax.jit(hbcnn_forward)
    out = jax.block_until_ready(fwd(x, params))

    ref = hbcnn_reference(x, params)
    assert out.shape == (N, Out, H, W)
    # bf16 MXU operands (f32 accumulation) -> slightly looser tolerance than pure f32.
    assert jnp.allclose(out, ref, atol=3e-2, rtol=3e-2), float(
        jnp.max(jnp.abs(out - ref)))

    print("KERNEL_OK")
</pallas_src>

<mosaic_0001>
module attributes {stable_mosaic.version = 11 : i64} {
  func.func @_hbcnn_kernel(%arg0: i32, %arg1: memref<1x16x256xf32, #tpu.memory_space<vmem>>, %arg2: memref<144x256xf32, #tpu.memory_space<vmem>>, %arg3: memref<16x144xbf16, #tpu.memory_space<vmem>>, %arg4: memref<16x1xf32, #tpu.memory_space<vmem>>, %arg5: memref<16x144xbf16, #tpu.memory_space<vmem>>, %arg6: memref<16x1xf32, #tpu.memory_space<vmem>>, %arg7: memref<16x144xbf16, #tpu.memory_space<vmem>>, %arg8: memref<16x1xf32, #tpu.memory_space<vmem>>, %arg9: memref<16x144xbf16, #tpu.memory_space<vmem>>, %arg10: memref<16x1xf32, #tpu.memory_space<vmem>>, %arg11: memref<16x144xbf16, #tpu.memory_space<vmem>>, %arg12: memref<16x1xf32, #tpu.memory_space<vmem>>, %arg13: memref<1x16x256xf32, #tpu.memory_space<vmem>>, %arg14: memref<144x256xbf16, #tpu.memory_space<vmem>>) attributes {dimension_semantics = [#tpu.dimension_semantics<parallel>], iteration_bounds = array<i64: 2>, scalar_prefetch = 0 : i64, scratch_operands = 1 : i64, tpu.core_type = #tpu.core_type<tc>, window_params = [{transform_indices = @transform_0, window_bounds = array<i64: 1, 16, 256>}, {pipeline_mode = #tpu.pipeline_mode<synchronous>, transform_indices = @transform_1, window_bounds = array<i64: 144, 256>}, {pipeline_mode = #tpu.pipeline_mode<synchronous>, transform_indices = @transform_2, window_bounds = array<i64: 16, 144>}, {pipeline_mode = #tpu.pipeline_mode<synchronous>, transform_indices = @transform_3, window_bounds = array<i64: 16, 1>}, {pipeline_mode = #tpu.pipeline_mode<synchronous>, transform_indices = @transform_4, window_bounds = array<i64: 16, 144>}, {pipeline_mode = #tpu.pipeline_mode<synchronous>, transform_indices = @transform_5, window_bounds = array<i64: 16, 1>}, {pipeline_mode = #tpu.pipeline_mode<synchronous>, transform_indices = @transform_6, window_bounds = array<i64: 16, 144>}, {pipeline_mode = #tpu.pipeline_mode<synchronous>, transform_indices = @transform_7, window_bounds = array<i64: 16, 1>}, {pipeline_mode = #tpu.pipeline_mode<synchronous>, transform_indices = @transform_8, window_bounds = array<i64: 16, 144>}, {pipeline_mode = #tpu.pipeline_mode<synchronous>, transform_indices = @transform_9, window_bounds = array<i64: 16, 1>}, {pipeline_mode = #tpu.pipeline_mode<synchronous>, transform_indices = @transform_10, window_bounds = array<i64: 16, 144>}, {pipeline_mode = #tpu.pipeline_mode<synchronous>, transform_indices = @transform_11, window_bounds = array<i64: 16, 1>}, {transform_indices = @transform_12, window_bounds = array<i64: 1, 16, 256>}]} {
    %c0 = arith.constant 0 : index
    %c0_0 = arith.constant 0 : index
    %c0_1 = arith.constant 0 : index
    %0 = vector.load %arg1[%c0, %c0_0, %c0_1] : memref<1x16x256xf32, #tpu.memory_space<vmem>>, vector<1x16x256xf32>
    %1 = vector.shape_cast %0 : vector<1x16x256xf32> to vector<16x256xf32>
    %2 = vector.extract_strided_slice %1 {offsets = [0, 239], sizes = [16, 17], strides = [1, 1]} : vector<16x256xf32> to vector<16x17xf32>
    %3 = vector.extract_strided_slice %1 {offsets = [0, 0], sizes = [16, 239], strides = [1, 1]} : vector<16x256xf32> to vector<16x239xf32>
    %4 = tpu.concatenate %2, %3 in 1 : vector<16x17xf32>, vector<16x239xf32> -> vector<16x256xf32>
    %c0_2 = arith.constant 0 : index
    %c0_3 = arith.constant 0 : index
    %5 = vector.load %arg2[%c0_2, %c0_3] : memref<144x256xf32, #tpu.memory_space<vmem>>, vector<16x256xf32>
    %6 = arith.mulf %4, %5 : vector<16x256xf32>
    %7 = arith.truncf %6 : vector<16x256xf32> to vector<16x256xbf16>
    %c0_4 = arith.constant 0 : index
    %c0_5 = arith.constant 0 : index
    %8 = vector.load %arg14[%c0_4, %c0_5] : memref<144x256xbf16, #tpu.memory_space<vmem>>, vector<16x256xbf16>
    tpu.vector_store %arg14[%c0_4, %c0_5], %7 {strides = array<i32>} : memref<144x256xbf16, #tpu.memory_space<vmem>>, vector<16x256xbf16>,
    %9 = vector.extract_strided_slice %1 {offsets = [0, 240], sizes = [16, 16], strides = [1, 1]} : vector<16x256xf32> to vector<16x16xf32>
    %10 = vector.extract_strided_slice %1 {offsets = [0, 0], sizes = [16, 240], strides = [1, 1]} : vector<16x256xf32> to vector<16x240xf32>
    %11 = tpu.concatenate %9, %10 in 1 : vector<16x16xf32>, vector<16x240xf32> -> vector<16x256xf32>
    %c16 = arith.constant 16 : index
    %c0_6 = arith.constant 0 : index
    %12 = vector.load %arg2[%c16, %c0_6] : memref<144x256xf32, #tpu.memory_space<vmem>>, vector<16x256xf32>
    %13 = arith.mulf %11, %12 : vector<16x256xf32>
    %14 = arith.truncf %13 : vector<16x256xf32> to vector<16x256xbf16>
    %c16_7 = arith.constant 16 : index
    %c0_8 = arith.constant 0 : index
    %15 = vector.load %arg14[%c16_7, %c0_8] : memref<144x256xbf16, #tpu.memory_space<vmem>>, vector<16x256xbf16>
    tpu.vector_store %arg14[%c16_7, %c0_8], %14 {strides = array<i32>} : memref<144x256xbf16, #tpu.memory_space<vmem>>, vector<16x256xbf16>,
    %16 = vector.extract_strided_slice %1 {offsets = [0, 241], sizes = [16, 15], strides = [1, 1]} : vector<16x256xf32> to vector<16x15xf32>
    %17 = vector.extract_strided_slice %1 {offsets = [0, 0], sizes = [16, 241], strides = [1, 1]} : vector<16x256xf32> to vector<16x241xf32>
    %18 = tpu.concatenate %16, %17 in 1 : vector<16x15xf32>, vector<16x241xf32> -> vector<16x256xf32>
    %c32 = arith.constant 32 : index
    %c0_9 = arith.constant 0 : index
    %19 = vector.load %arg2[%c32, %c0_9] : memref<144x256xf32, #tpu.memory_space<vmem>>, vector<16x256xf32>
    %20 = arith.mulf %18, %19 : vector<16x256xf32>
    %21 = arith.truncf %20 : vector<16x256xf32> to vector<16x256xbf16>
    %c32_10 = arith.constant 32 : index
    %c0_11 = arith.constant 0 : index
    %22 = vector.load %arg14[%c32_10, %c0_11] : memref<144x256xbf16, #tpu.memory_space<vmem>>, vector<16x256xbf16>
    tpu.vector_store %arg14[%c32_10, %c0_11], %21 {strides = array<i32>} : memref<144x256xbf16, #tpu.memory_space<vmem>>, vector<16x256xbf16>,
    %23 = vector.extract_strided_slice %1 {offsets = [0, 255], sizes = [16, 1], strides = [1, 1]} : vector<16x256xf32> to vector<16x1xf32>
    %24 = vector.extract_strided_slice %1 {offsets = [0, 0], sizes = [16, 255], strides = [1, 1]} : vector<16x256xf32> to vector<16x255xf32>
    %25 = tpu.concatenate %23, %24 in 1 : vector<16x1xf32>, vector<16x255xf32> -> vector<16x256xf32>
    %c48 = arith.constant 48 : index
    %c0_12 = arith.constant 0 : index
    %26 = vector.load %arg2[%c48, %c0_12] : memref<144x256xf32, #tpu.memory_space<vmem>>, vector<16x256xf32>
    %27 = arith.mulf %25, %26 : vector<16x256xf32>
    %28 = arith.truncf %27 : vector<16x256xf32> to vector<16x256xbf16>
    %c48_13 = arith.constant 48 : index
    %c0_14 = arith.constant 0 : index
    %29 = vector.load %arg14[%c48_13, %c0_14] : memref<144x256xbf16, #tpu.memory_space<vmem>>, vector<16x256xbf16>
    tpu.vector_store %arg14[%c48_13, %c0_14], %28 {strides = array<i32>} : memref<144x256xbf16, #tpu.memory_space<vmem>>, vector<16x256xbf16>,
    %30 = arith.truncf %1 : vector<16x256xf32> to vector<16x256xbf16>
    %c64 = arith.constant 64 : index
    %c0_15 = arith.constant 0 : index
    %31 = vector.load %arg14[%c64, %c0_15] : memref<144x256xbf16, #tpu.memory_space<vmem>>, vector<16x256xbf16>
    tpu.vector_store %arg14[%c64, %c0_15], %30 {strides = array<i32>} : memref<144x256xbf16, #tpu.memory_space<vmem>>, vector<16x256xbf16>,
    %32 = vector.extract_strided_slice %1 {offsets = [0, 1], sizes = [16, 255], strides = [1, 1]} : vector<16x256xf32> to vector<16x255xf32>
    %33 = vector.extract_strided_slice %1 {offsets = [0, 0], sizes = [16, 1], strides = [1, 1]} : vector<16x256xf32> to vector<16x1xf32>
    %34 = tpu.concatenate %32, %33 in 1 : vector<16x255xf32>, vector<16x1xf32> -> vector<16x256xf32>
    %c80 = arith.constant 80 : index
    %c0_16 = arith.constant 0 : index
    %35 = vector.load %arg2[%c80, %c0_16] : memref<144x256xf32, #tpu.memory_space<vmem>>, vector<16x256xf32>
    %36 = arith.mulf %34, %35 : vector<16x256xf32>
    %37 = arith.truncf %36 : vector<16x256xf32> to vector<16x256xbf16>
    %c80_17 = arith.constant 80 : index
    %c0_18 = arith.constant 0 : index
    %38 = vector.load %arg14[%c80_17, %c0_18] : memref<144x256xbf16, #tpu.memory_space<vmem>>, vector<16x256xbf16>
    tpu.vector_store %arg14[%c80_17, %c0_18], %37 {strides = array<i32>} : memref<144x256xbf16, #tpu.memory_space<vmem>>, vector<16x256xbf16>,
    %39 = vector.extract_strided_slice %1 {offsets = [0, 15], sizes = [16, 241], strides = [1, 1]} : vector<16x256xf32> to vector<16x241xf32>
    %40 = vector.extract_strided_slice %1 {offsets = [0, 0], sizes = [16, 15], strides = [1, 1]} : vector<16x256xf32> to vector<16x15xf32>
    %41 = tpu.concatenate %39, %40 in 1 : vector<16x241xf32>, vector<16x15xf32> -> vector<16x256xf32>
    %c96 = arith.constant 96 : index
    %c0_19 = arith.constant 0 : index
    %42 = vector.load %arg2[%c96, %c0_19] : memref<144x256xf32, #tpu.memory_space<vmem>>, vector<16x256xf32>
    %43 = arith.mulf %41, %42 : vector<16x256xf32>
    %44 = arith.truncf %43 : vector<16x256xf32> to vector<16x256xbf16>
    %c96_20 = arith.constant 96 : index
    %c0_21 = arith.constant 0 : index
    %45 = vector.load %arg14[%c96_20, %c0_21] : memref<144x256xbf16, #tpu.memory_space<vmem>>, vector<16x256xbf16>
    tpu.vector_store %arg14[%c96_20, %c0_21], %44 {strides = array<i32>} : memref<144x256xbf16, #tpu.memory_space<vmem>>, vector<16x256xbf16>,
    %46 = vector.extract_strided_slice %1 {offsets = [0, 16], sizes = [16, 240], strides = [1, 1]} : vector<16x256xf32> to vector<16x240xf32>
    %47 = vector.extract_strided_slice %1 {offsets = [0, 0], sizes = [16, 16], strides = [1, 1]} : vector<16x256xf32> to vector<16x16xf32>
    %48 = tpu.concatenate %46, %47 in 1 : vector<16x240xf32>, vector<16x16xf32> -> vector<16x256xf32>
    %c112 = arith.constant 112 : index
    %c0_22 = arith.constant 0 : index
    %49 = vector.load %arg2[%c112, %c0_22] : memref<144x256xf32, #tpu.memory_space<vmem>>, vector<16x256xf32>
    %50 = arith.mulf %48, %49 : vector<16x256xf32>
    %51 = arith.truncf %50 : vector<16x256xf32> to vector<16x256xbf16>
    %c112_23 = arith.constant 112 : index
    %c0_24 = arith.constant 0 : index
    %52 = vector.load %arg14[%c112_23, %c0_24] : memref<144x256xbf16, #tpu.memory_space<vmem>>, vector<16x256xbf16>
    tpu.vector_store %arg14[%c112_23, %c0_24], %51 {strides = array<i32>} : memref<144x256xbf16, #tpu.memory_space<vmem>>, vector<16x256xbf16>,
    %53 = vector.extract_strided_slice %1 {offsets = [0, 17], sizes = [16, 239], strides = [1, 1]} : vector<16x256xf32> to vector<16x239xf32>
    %54 = vector.extract_strided_slice %1 {offsets = [0, 0], sizes = [16, 17], strides = [1, 1]} : vector<16x256xf32> to vector<16x17xf32>
    %55 = tpu.concatenate %53, %54 in 1 : vector<16x239xf32>, vector<16x17xf32> -> vector<16x256xf32>
    %c128 = arith.constant 128 : index
    %c0_25 = arith.constant 0 : index
    %56 = vector.load %arg2[%c128, %c0_25] : memref<144x256xf32, #tpu.memory_space<vmem>>, vector<16x256xf32>
    %57 = arith.mulf %55, %56 : vector<16x256xf32>
    %58 = arith.truncf %57 : vector<16x256xf32> to vector<16x256xbf16>
    %c128_26 = arith.constant 128 : index
    %c0_27 = arith.constant 0 : index
    %59 = vector.load %arg14[%c128_26, %c0_27] : memref<144x256xbf16, #tpu.memory_space<vmem>>, vector<16x256xbf16>
    tpu.vector_store %arg14[%c128_26, %c0_27], %58 {strides = array<i32>} : memref<144x256xbf16, #tpu.memory_space<vmem>>, vector<16x256xbf16>,
    %c0_28 = arith.constant 0 : index
    %c0_29 = arith.constant 0 : index
    %60 = vector.load %arg3[%c0_28, %c0_29] : memref<16x144xbf16, #tpu.memory_space<vmem>>, vector<16x144xbf16>
    %c0_30 = arith.constant 0 : index
    %c0_31 = arith.constant 0 : index
    %61 = vector.load %arg14[%c0_30, %c0_31] : memref<144x256xbf16, #tpu.memory_space<vmem>>, vector<144x256xbf16>
    %cst = arith.constant dense<0.000000e+00> : vector<16x256xf32>
    %62 = tpu.matmul %60, %61, %cst {dimension_numbers = #tpu.dot_dimension_numbers<[1], [0], [0], [1], [0, 0, 1, 1], [], []>} : vector<16x144xbf16>, vector<144x256xbf16>, vector<16x256xf32> -> vector<16x256xf32>
    %c0_32 = arith.constant 0 : index
    %c0_33 = arith.constant 0 : index
    %63 = vector.load %arg4[%c0_32, %c0_33] : memref<16x1xf32, #tpu.memory_space<vmem>>, vector<16x1xf32>
    %64 = vector.broadcast %63 : vector<16x1xf32> to vector<16x256xf32>
    %65 = arith.addf %62, %64 : vector<16x256xf32>
    %cst_34 = arith.constant 0.000000e+00 : f32
    %66 = vector.broadcast %cst_34 : f32 to vector<16x256xf32>
    %67 = arith.maximumf %65, %66 : vector<16x256xf32>
    %68 = vector.extract_strided_slice %67 {offsets = [0, 239], sizes = [16, 17], strides = [1, 1]} : vector<16x256xf32> to vector<16x17xf32>
    %69 = vector.extract_strided_slice %67 {offsets = [0, 0], sizes = [16, 239], strides = [1, 1]} : vector<16x256xf32> to vector<16x239xf32>
    %70 = tpu.concatenate %68, %69 in 1 : vector<16x17xf32>, vector<16x239xf32> -> vector<16x256xf32>
    %c0_35 = arith.constant 0 : index
    %c0_36 = arith.constant 0 : index
    %71 = vector.load %arg2[%c0_35, %c0_36] : memref<144x256xf32, #tpu.memory_space<vmem>>, vector<16x256xf32>
    %72 = arith.mulf %70, %71 : vector<16x256xf32>
    %73 = arith.truncf %72 : vector<16x256xf32> to vector<16x256xbf16>
    %c0_37 = arith.constant 0 : index
    %c0_38 = arith.constant 0 : index
    %74 = vector.load %arg14[%c0_37, %c0_38] : memref<144x256xbf16, #tpu.memory_space<vmem>>, vector<16x256xbf16>
    tpu.vector_store %arg14[%c0_37, %c0_38], %73 {strides = array<i32>} : memref<144x256xbf16, #tpu.memory_space<vmem>>, vector<16x256xbf16>,
    %75 = vector.extract_strided_slice %67 {offsets = [0, 240], sizes = [16, 16], strides = [1, 1]} : vector<16x256xf32> to vector<16x16xf32>
    %76 = vector.extract_strided_slice %67 {offsets = [0, 0], sizes = [16, 240], strides = [1, 1]} : vector<16x256xf32> to vector<16x240xf32>
    %77 = tpu.concatenate %75, %76 in 1 : vector<16x16xf32>, vector<16x240xf32> -> vector<16x256xf32>
    %c16_39 = arith.constant 16 : index
    %c0_40 = arith.constant 0 : index
    %78 = vector.load %arg2[%c16_39, %c0_40] : memref<144x256xf32, #tpu.memory_space<vmem>>, vector<16x256xf32>
    %79 = arith.mulf %77, %78 : vector<16x256xf32>
    %80 = arith.truncf %79 : vector<16x256xf32> to vector<16x256xbf16>
    %c16_41 = arith.constant 16 : index
    %c0_42 = arith.constant 0 : index
    %81 = vector.load %arg14[%c16_41, %c0_42] : memref<144x256xbf16, #tpu.memory_space<vmem>>, vector<16x256xbf16>
    tpu.vector_store %arg14[%c16_41, %c0_42], %80 {strides = array<i32>} : memref<144x256xbf16, #tpu.memory_space<vmem>>, vector<16x256xbf16>,
    %82 = vector.extract_strided_slice %67 {offsets = [0, 241], sizes = [16, 15], strides = [1, 1]} : vector<16x256xf32> to vector<16x15xf32>
    %83 = vector.extract_strided_slice %67 {offsets = [0, 0], sizes = [16, 241], strides = [1, 1]} : vector<16x256xf32> to vector<16x241xf32>
    %84 = tpu.concatenate %82, %83 in 1 : vector<16x15xf32>, vector<16x241xf32> -> vector<16x256xf32>
    %c32_43 = arith.constant 32 : index
    %c0_44 = arith.constant 0 : index
    %85 = vector.load %arg2[%c32_43, %c0_44] : memref<144x256xf32, #tpu.memory_space<vmem>>, vector<16x256xf32>
    %86 = arith.mulf %84, %85 : vector<16x256xf32>
    %87 = arith.truncf %86 : vector<16x256xf32> to vector<16x256xbf16>
    %c32_45 = arith.constant 32 : index
    %c0_46 = arith.constant 0 : index
    %88 = vector.load %arg14[%c32_45, %c0_46] : memref<144x256xbf16, #tpu.memory_space<vmem>>, vector<16x256xbf16>
    tpu.vector_store %arg14[%c32_45, %c0_46], %87 {strides = array<i32>} : memref<144x256xbf16, #tpu.memory_space<vmem>>, vector<16x256xbf16>,
    %89 = vector.extract_strided_slice %67 {offsets = [0, 255], sizes = [16, 1], strides = [1, 1]} : vector<16x256xf32> to vector<16x1xf32>
    %90 = vector.extract_strided_slice %67 {offsets = [0, 0], sizes = [16, 255], strides = [1, 1]} : vector<16x256xf32> to vector<16x255xf32>
    %91 = tpu.concatenate %89, %90 in 1 : vector<16x1xf32>, vector<16x255xf32> -> vector<16x256xf32>
    %c48_47 = arith.constant 48 : index
    %c0_48 = arith.constant 0 : index
    %92 = vector.load %arg2[%c48_47, %c0_48] : memref<144x256xf32, #tpu.memory_space<vmem>>, vector<16x256xf32>
    %93 = arith.mulf %91, %92 : vector<16x256xf32>
    %94 = arith.truncf %93 : vector<16x256xf32> to vector<16x256xbf16>
    %c48_49 = arith.constant 48 : index
    %c0_50 = arith.constant 0 : index
    %95 = vector.load %arg14[%c48_49, %c0_50] : memref<144x256xbf16, #tpu.memory_space<vmem>>, vector<16x256xbf16>
    tpu.vector_store %arg14[%c48_49, %c0_50], %94 {strides = array<i32>} : memref<144x256xbf16, #tpu.memory_space<vmem>>, vector<16x256xbf16>,
    %96 = arith.truncf %67 : vector<16x256xf32> to vector<16x256xbf16>
    %c64_51 = arith.constant 64 : index
    %c0_52 = arith.constant 0 : index
    %97 = vector.load %arg14[%c64_51, %c0_52] : memref<144x256xbf16, #tpu.memory_space<vmem>>, vector<16x256xbf16>
    tpu.vector_store %arg14[%c64_51, %c0_52], %96 {strides = array<i32>} : memref<144x256xbf16, #tpu.memory_space<vmem>>, vector<16x256xbf16>,
    %98 = vector.extract_strided_slice %67 {offsets = [0, 1], sizes = [16, 255], strides = [1, 1]} : vector<16x256xf32> to vector<16x255xf32>
    %99 = vector.extract_strided_slice %67 {offsets = [0, 0], sizes = [16, 1], strides = [1, 1]} : vector<16x256xf32> to vector<16x1xf32>
    %100 = tpu.concatenate %98, %99 in 1 : vector<16x255xf32>, vector<16x1xf32> -> vector<16x256xf32>
    %c80_53 = arith.constant 80 : index
    %c0_54 = arith.constant 0 : index
    %101 = vector.load %arg2[%c80_53, %c0_54] : memref<144x256xf32, #tpu.memory_space<vmem>>, vector<16x256xf32>
    %102 = arith.mulf %100, %101 : vector<16x256xf32>
    %103 = arith.truncf %102 : vector<16x256xf32> to vector<16x256xbf16>
    %c80_55 = arith.constant 80 : index
    %c0_56 = arith.constant 0 : index
    %104 = vector.load %arg14[%c80_55, %c0_56] : memref<144x256xbf16, #tpu.memory_space<vmem>>, vector<16x256xbf16>
    tpu.vector_store %arg14[%c80_55, %c0_56], %103 {strides = array<i32>} : memref<144x256xbf16, #tpu.memory_space<vmem>>, vector<16x256xbf16>,
    %105 = vector.extract_strided_slice %67 {offsets = [0, 15], sizes = [16, 241], strides = [1, 1]} : vector<16x256xf32> to vector<16x241xf32>
    %106 = vector.extract_strided_slice %67 {offsets = [0, 0], sizes = [16, 15], strides = [1, 1]} : vector<16x256xf32> to vector<16x15xf32>
    %107 = tpu.concatenate %105, %106 in 1 : vector<16x241xf32>, vector<16x15xf32> -> vector<16x256xf32>
    %c96_57 = arith.constant 96 : index
    %c0_58 = arith.constant 0 : index
    %108 = vector.load %arg2[%c96_57, %c0_58] : memref<144x256xf32, #tpu.memory_space<vmem>>, vector<16x256xf32>
    %109 = arith.mulf %107, %108 : vector<16x256xf32>
    %110 = arith.truncf %109 : vector<16x256xf32> to vector<16x256xbf16>
    %c96_59 = arith.constant 96 : index
    %c0_60 = arith.constant 0 : index
    %111 = vector.load %arg14[%c96_59, %c0_60] : memref<144x256xbf16, #tpu.memory_space<vmem>>, vector<16x256xbf16>
    tpu.vector_store %arg14[%c96_59, %c0_60], %110 {strides = array<i32>} : memref<144x256xbf16, #tpu.memory_space<vmem>>, vector<16x256xbf16>,
    %112 = vector.extract_strided_slice %67 {offsets = [0, 16], sizes = [16, 240], strides = [1, 1]} : vector<16x256xf32> to vector<16x240xf32>
    %113 = vector.extract_strided_slice %67 {offsets = [0, 0], sizes = [16, 16], strides = [1, 1]} : vector<16x256xf32> to vector<16x16xf32>
    %114 = tpu.concatenate %112, %113 in 1 : vector<16x240xf32>, vector<16x16xf32> -> vector<16x256xf32>
    %c112_61 = arith.constant 112 : index
    %c0_62 = arith.constant 0 : index
    %115 = vector.load %arg2[%c112_61, %c0_62] : memref<144x256xf32, #tpu.memory_space<vmem>>, vector<16x256xf32>
    %116 = arith.mulf %114, %115 : vector<16x256xf32>
    %117 = arith.truncf %116 : vector<16x256xf32> to vector<16x256xbf16>
    %c112_63 = arith.constant 112 : index
    %c0_64 = arith.constant 0 : index
    %118 = vector.load %arg14[%c112_63, %c0_64] : memref<144x256xbf16, #tpu.memory_space<vmem>>, vector<16x256xbf16>
    tpu.vector_store %arg14[%c112_63, %c0_64], %117 {strides = array<i32>} : memref<144x256xbf16, #tpu.memory_space<vmem>>, vector<16x256xbf16>,
    %119 = vector.extract_strided_slice %67 {offsets = [0, 17], sizes = [16, 239], strides = [1, 1]} : vector<16x256xf32> to vector<16x239xf32>
    %120 = vector.extract_strided_slice %67 {offsets = [0, 0], sizes = [16, 17], strides = [1, 1]} : vector<16x256xf32> to vector<16x17xf32>
    %121 = tpu.concatenate %119, %120 in 1 : vector<16x239xf32>, vector<16x17xf32> -> vector<16x256xf32>
    %c128_65 = arith.constant 128 : index
    %c0_66 = arith.constant 0 : index
    %122 = vector.load %arg2[%c128_65, %c0_66] : memref<144x256xf32, #tpu.memory_space<vmem>>, vector<16x256xf32>
    %123 = arith.mulf %121, %122 : vector<16x256xf32>
    %124 = arith.truncf %123 : vector<16x256xf32> to vector<16x256xbf16>
    %c128_67 = arith.constant 128 : index
    %c0_68 = arith.constant 0 : index
    %125 = vector.load %arg14[%c128_67, %c0_68] : memref<144x256xbf16, #tpu.memory_space<vmem>>, vector<16x256xbf16>
    tpu.vector_store %arg14[%c128_67, %c0_68], %124 {strides = array<i32>} : memref<144x256xbf16, #tpu.memory_space<vmem>>, vector<16x256xbf16>,
    %c0_69 = arith.constant 0 : index
    %c0_70 = arith.constant 0 : index
    %126 = vector.load %arg5[%c0_69, %c0_70] : memref<16x144xbf16, #tpu.memory_space<vmem>>, vector<16x144xbf16>
    %c0_71 = arith.constant 0 : index
    %c0_72 = arith.constant 0 : index
    %127 = vector.load %arg14[%c0_71, %c0_72] : memref<144x256xbf16, #tpu.memory_space<vmem>>, vector<144x256xbf16>
    %cst_73 = arith.constant dense<0.000000e+00> : vector<16x256xf32>
    %128 = tpu.matmul %126, %127, %cst_73 {dimension_numbers = #tpu.dot_dimension_numbers<[1], [0], [0], [1], [0, 0, 1, 1], [], []>} : vector<16x144xbf16>, vector<144x256xbf16>, vector<16x256xf32> -> vector<16x256xf32>
    %c0_74 = arith.constant 0 : index
    %c0_75 = arith.constant 0 : index
    %129 = vector.load %arg6[%c0_74, %c0_75] : memref<16x1xf32, #tpu.memory_space<vmem>>, vector<16x1xf32>
    %130 = vector.broadcast %129 : vector<16x1xf32> to vector<16x256xf32>
    %131 = arith.addf %128, %130 : vector<16x256xf32>
    %cst_76 = arith.constant 0.000000e+00 : f32
    %132 = vector.broadcast %cst_76 : f32 to vector<16x256xf32>
    %133 = arith.maximumf %131, %132 : vector<16x256xf32>
    %134 = vector.extract_strided_slice %133 {offsets = [0, 239], sizes = [16, 17], strides = [1, 1]} : vector<16x256xf32> to vector<16x17xf32>
    %135 = vector.extract_strided_slice %133 {offsets = [0, 0], sizes = [16, 239], strides = [1, 1]} : vector<16x256xf32> to vector<16x239xf32>
    %136 = tpu.concatenate %134, %135 in 1 : vector<16x17xf32>, vector<16x239xf32> -> vector<16x256xf32>
    %c0_77 = arith.constant 0 : index
    %c0_78 = arith.constant 0 : index
    %137 = vector.load %arg2[%c0_77, %c0_78] : memref<144x256xf32, #tpu.memory_space<vmem>>, vector<16x256xf32>
    %138 = arith.mulf %136, %137 : vector<16x256xf32>
    %139 = arith.truncf %138 : vector<16x256xf32> to vector<16x256xbf16>
    %c0_79 = arith.constant 0 : index
    %c0_80 = arith.constant 0 : index
    %140 = vector.load %arg14[%c0_79, %c0_80] : memref<144x256xbf16, #tpu.memory_space<vmem>>, vector<16x256xbf16>
    tpu.vector_store %arg14[%c0_79, %c0_80], %139 {strides = array<i32>} : memref<144x256xbf16, #tpu.memory_space<vmem>>, vector<16x256xbf16>,
    %141 = vector.extract_strided_slice %133 {offsets = [0, 240], sizes = [16, 16], strides = [1, 1]} : vector<16x256xf32> to vector<16x16xf32>
    %142 = vector.extract_strided_slice %133 {offsets = [0, 0], sizes = [16, 240], strides = [1, 1]} : vector<16x256xf32> to vector<16x240xf32>
    %143 = tpu.concatenate %141, %142 in 1 : vector<16x16xf32>, vector<16x240xf32> -> vector<16x256xf32>
    %c16_81 = arith.constant 16 : index
    %c0_82 = arith.constant 0 : index
    %144 = vector.load %arg2[%c16_81, %c0_82] : memref<144x256xf32, #tpu.memory_space<vmem>>, vector<16x256xf32>
    %145 = arith.mulf %143, %144 : vector<16x256xf32>
    %146 = arith.truncf %145 : vector<16x256xf32> to vector<16x256xbf16>
    %c16_83 = arith.constant 16 : index
    %c0_84 = arith.constant 0 : index
    %147 = vector.load %arg14[%c16_83, %c0_84] : memref<144x256xbf16, #tpu.memory_space<vmem>>, vector<16x256xbf16>
    tpu.vector_store %arg14[%c16_83, %c0_84], %146 {strides = array<i32>} : memref<144x256xbf16, #tpu.memory_space<vmem>>, vector<16x256xbf16>,
    %148 = vector.extract_strided_slice %133 {offsets = [0, 241], sizes = [16, 15], strides = [1, 1]} : vector<16x256xf32> to vector<16x15xf32>
    %149 = vector.extract_strided_slice %133 {offsets = [0, 0], sizes = [16, 241], strides = [1, 1]} : vector<16x256xf32> to vector<16x241xf32>
    %150 = tpu.concatenate %148, %149 in 1 : vector<16x15xf32>, vector<16x241xf32> -> vector<16x256xf32>
    %c32_85 = arith.constant 32 : index
    %c0_86 = arith.constant 0 : index
    %151 = vector.load %arg2[%c32_85, %c0_86] : memref<144x256xf32, #tpu.memory_space<vmem>>, vector<16x256xf32>
    %152 = arith.mulf %150, %151 : vector<16x256xf32>
    %153 = arith.truncf %152 : vector<16x256xf32> to vector<16x256xbf16>
    %c32_87 = arith.constant 32 : index
    %c0_88 = arith.constant 0 : index
    %154 = vector.load %arg14[%c32_87, %c0_88] : memref<144x256xbf16, #tpu.memory_space<vmem>>, vector<16x256xbf16>
    tpu.vector_store %arg14[%c32_87, %c0_88], %153 {strides = array<i32>} : memref<144x256xbf16, #tpu.memory_space<vmem>>, vector<16x256xbf16>,
    %155 = vector.extract_strided_slice %133 {offsets = [0, 255], sizes = [16, 1], strides = [1, 1]} : vector<16x256xf32> to vector<16x1xf32>
    %156 = vector.extract_strided_slice %133 {offsets = [0, 0], sizes = [16, 255], strides = [1, 1]} : vector<16x256xf32> to vector<16x255xf32>
    %157 = tpu.concatenate %155, %156 in 1 : vector<16x1xf32>, vector<16x255xf32> -> vector<16x256xf32>
    %c48_89 = arith.constant 48 : index
    %c0_90 = arith.constant 0 : index
    %158 = vector.load %arg2[%c48_89, %c0_90] : memref<144x256xf32, #tpu.memory_space<vmem>>, vector<16x256xf32>
    %159 = arith.mulf %157, %158 : vector<16x256xf32>
    %160 = arith.truncf %159 : vector<16x256xf32> to vector<16x256xbf16>
    %c48_91 = arith.constant 48 : index
    %c0_92 = arith.constant 0 : index
    %161 = vector.load %arg14[%c48_91, %c0_92] : memref<144x256xbf16, #tpu.memory_space<vmem>>, vector<16x256xbf16>
    tpu.vector_store %arg14[%c48_91, %c0_92], %160 {strides = array<i32>} : memref<144x256xbf16, #tpu.memory_space<vmem>>, vector<16x256xbf16>,
    %162 = arith.truncf %133 : vector<16x256xf32> to vector<16x256xbf16>
    %c64_93 = arith.constant 64 : index
    %c0_94 = arith.constant 0 : index
    %163 = vector.load %arg14[%c64_93, %c0_94] : memref<144x256xbf16, #tpu.memory_space<vmem>>, vector<16x256xbf16>
    tpu.vector_store %arg14[%c64_93, %c0_94], %162 {strides = array<i32>} : memref<144x256xbf16, #tpu.memory_space<vmem>>, vector<16x256xbf16>,
    %164 = vector.extract_strided_slice %133 {offsets = [0, 1], sizes = [16, 255], strides = [1, 1]} : vector<16x256xf32> to vector<16x255xf32>
    %165 = vector.extract_strided_slice %133 {offsets = [0, 0], sizes = [16, 1], strides = [1, 1]} : vector<16x256xf32> to vector<16x1xf32>
    %166 = tpu.concatenate %164, %165 in 1 : vector<16x255xf32>, vector<16x1xf32> -> vector<16x256xf32>
    %c80_95 = arith.constant 80 : index
    %c0_96 = arith.constant 0 : index
    %167 = vector.load %arg2[%c80_95, %c0_96] : memref<144x256xf32, #tpu.memory_space<vmem>>, vector<16x256xf32>
    %168 = arith.mulf %166, %167 : vector<16x256xf32>
    %169 = arith.truncf %168 : vector<16x256xf32> to vector<16x256xbf16>
    %c80_97 = arith.constant 80 : index
    %c0_98 = arith.constant 0 : index
    %170 = vector.load %arg14[%c80_97, %c0_98] : memref<144x256xbf16, #tpu.memory_space<vmem>>, vector<16x256xbf16>
    tpu.vector_store %arg14[%c80_97, %c0_98], %169 {strides = array<i32>} : memref<144x256xbf16, #tpu.memory_space<vmem>>, vector<16x256xbf16>,
    %171 = vector.extract_strided_slice %133 {offsets = [0, 15], sizes = [16, 241], strides = [1, 1]} : vector<16x256xf32> to vector<16x241xf32>
    %172 = vector.extract_strided_slice %133 {offsets = [0, 0], sizes = [16, 15], strides = [1, 1]} : vector<16x256xf32> to vector<16x15xf32>
    %173 = tpu.concatenate %171, %172 in 1 : vector<16x241xf32>, vector<16x15xf32> -> vector<16x256xf32>
    %c96_99 = arith.constant 96 : index
    %c0_100 = arith.constant 0 : index
    %174 = vector.load %arg2[%c96_99, %c0_100] : memref<144x256xf32, #tpu.memory_space<vmem>>, vector<16x256xf32>
    %175 = arith.mulf %173, %174 : vector<16x256xf32>
    %176 = arith.truncf %175 : vector<16x256xf32> to vector<16x256xbf16>
    %c96_101 = arith.constant 96 : index
    %c0_102 = arith.constant 0 : index
    %177 = vector.load %arg14[%c96_101, %c0_102] : memref<144x256xbf16, #tpu.memory_space<vmem>>, vector<16x256xbf16>
    tpu.vector_store %arg14[%c96_101, %c0_102], %176 {strides = array<i32>} : memref<144x256xbf16, #tpu.memory_space<vmem>>, vector<16x256xbf16>,
    %178 = vector.extract_strided_slice %133 {offsets = [0, 16], sizes = [16, 240], strides = [1, 1]} : vector<16x256xf32> to vector<16x240xf32>
    %179 = vector.extract_strided_slice %133 {offsets = [0, 0], sizes = [16, 16], strides = [1, 1]} : vector<16x256xf32> to vector<16x16xf32>
    %180 = tpu.concatenate %178, %179 in 1 : vector<16x240xf32>, vector<16x16xf32> -> vector<16x256xf32>
    %c112_103 = arith.constant 112 : index
    %c0_104 = arith.constant 0 : index
    %181 = vector.load %arg2[%c112_103, %c0_104] : memref<144x256xf32, #tpu.memory_space<vmem>>, vector<16x256xf32>
    %182 = arith.mulf %180, %181 : vector<16x256xf32>
    %183 = arith.truncf %182 : vector<16x256xf32> to vector<16x256xbf16>
    %c112_105 = arith.constant 112 : index
    %c0_106 = arith.constant 0 : index
    %184 = vector.load %arg14[%c112_105, %c0_106] : memref<144x256xbf16, #tpu.memory_space<vmem>>, vector<16x256xbf16>
    tpu.vector_store %arg14[%c112_105, %c0_106], %183 {strides = array<i32>} : memref<144x256xbf16, #tpu.memory_space<vmem>>, vector<16x256xbf16>,
    %185 = vector.extract_strided_slice %133 {offsets = [0, 17], sizes = [16, 239], strides = [1, 1]} : vector<16x256xf32> to vector<16x239xf32>
    %186 = vector.extract_strided_slice %133 {offsets = [0, 0], sizes = [16, 17], strides = [1, 1]} : vector<16x256xf32> to vector<16x17xf32>
    %187 = tpu.concatenate %185, %186 in 1 : vector<16x239xf32>, vector<16x17xf32> -> vector<16x256xf32>
    %c128_107 = arith.constant 128 : index
    %c0_108 = arith.constant 0 : index
    %188 = vector.load %arg2[%c128_107, %c0_108] : memref<144x256xf32, #tpu.memory_space<vmem>>, vector<16x256xf32>
    %189 = arith.mulf %187, %188 : vector<16x256xf32>
    %190 = arith.truncf %189 : vector<16x256xf32> to vector<16x256xbf16>
    %c128_109 = arith.constant 128 : index
    %c0_110 = arith.constant 0 : index
    %191 = vector.load %arg14[%c128_109, %c0_110] : memref<144x256xbf16, #tpu.memory_space<vmem>>, vector<16x256xbf16>
    tpu.vector_store %arg14[%c128_109, %c0_110], %190 {strides = array<i32>} : memref<144x256xbf16, #tpu.memory_space<vmem>>, vector<16x256xbf16>,
    %c0_111 = arith.constant 0 : index
    %c0_112 = arith.constant 0 : index
    %192 = vector.load %arg7[%c0_111, %c0_112] : memref<16x144xbf16, #tpu.memory_space<vmem>>, vector<16x144xbf16>
    %c0_113 = arith.constant 0 : index
    %c0_114 = arith.constant 0 : index
    %193 = vector.load %arg14[%c0_113, %c0_114] : memref<144x256xbf16, #tpu.memory_space<vmem>>, vector<144x256xbf16>
    %cst_115 = arith.constant dense<0.000000e+00> : vector<16x256xf32>
    %194 = tpu.matmul %192, %193, %cst_115 {dimension_numbers = #tpu.dot_dimension_numbers<[1], [0], [0], [1], [0, 0, 1, 1], [], []>} : vector<16x144xbf16>, vector<144x256xbf16>, vector<16x256xf32> -> vector<16x256xf32>
    %c0_116 = arith.constant 0 : index
    %c0_117 = arith.constant 0 : index
    %195 = vector.load %arg8[%c0_116, %c0_117] : memref<16x1xf32, #tpu.memory_space<vmem>>, vector<16x1xf32>
    %196 = vector.broadcast %195 : vector<16x1xf32> to vector<16x256xf32>
    %197 = arith.addf %194, %196 : vector<16x256xf32>
    %cst_118 = arith.constant 0.000000e+00 : f32
    %198 = vector.broadcast %cst_118 : f32 to vector<16x256xf32>
    %199 = arith.maximumf %197, %198 : vector<16x256xf32>
    %200 = vector.extract_strided_slice %199 {offsets = [0, 239], sizes = [16, 17], strides = [1, 1]} : vector<16x256xf32> to vector<16x17xf32>
    %201 = vector.extract_strided_slice %199 {offsets = [0, 0], sizes = [16, 239], strides = [1, 1]} : vector<16x256xf32> to vector<16x239xf32>
    %202 = tpu.concatenate %200, %201 in 1 : vector<16x17xf32>, vector<16x239xf32> -> vector<16x256xf32>
    %c0_119 = arith.constant 0 : index
    %c0_120 = arith.constant 0 : index
    %203 = vector.load %arg2[%c0_119, %c0_120] : memref<144x256xf32, #tpu.memory_space<vmem>>, vector<16x256xf32>
    %204 = arith.mulf %202, %203 : vector<16x256xf32>
    %205 = arith.truncf %204 : vector<16x256xf32> to vector<16x256xbf16>
    %c0_121 = arith.constant 0 : index
    %c0_122 = arith.constant 0 : index
    %206 = vector.load %arg14[%c0_121, %c0_122] : memref<144x256xbf16, #tpu.memory_space<vmem>>, vector<16x256xbf16>
    tpu.vector_store %arg14[%c0_121, %c0_122], %205 {strides = array<i32>} : memref<144x256xbf16, #tpu.memory_space<vmem>>, vector<16x256xbf16>,
    %207 = vector.extract_strided_slice %199 {offsets = [0, 240], sizes = [16, 16], strides = [1, 1]} : vector<16x256xf32> to vector<16x16xf32>
    %208 = vector.extract_strided_slice %199 {offsets = [0, 0], sizes = [16, 240], strides = [1, 1]} : vector<16x256xf32> to vector<16x240xf32>
    %209 = tpu.concatenate %207, %208 in 1 : vector<16x16xf32>, vector<16x240xf32> -> vector<16x256xf32>
    %c16_123 = arith.constant 16 : index
    %c0_124 = arith.constant 0 : index
    %210 = vector.load %arg2[%c16_123, %c0_124] : memref<144x256xf32, #tpu.memory_space<vmem>>, vector<16x256xf32>
    %211 = arith.mulf %209, %210 : vector<16x256xf32>
    %212 = arith.truncf %211 : vector<16x256xf32> to vector<16x256xbf16>
    %c16_125 = arith.constant 16 : index
    %c0_126 = arith.constant 0 : index
    %213 = vector.load %arg14[%c16_125, %c0_126] : memref<144x256xbf16, #tpu.memory_space<vmem>>, vector<16x256xbf16>
    tpu.vector_store %arg14[%c16_125, %c0_126], %212 {strides = array<i32>} : memref<144x256xbf16, #tpu.memory_space<vmem>>, vector<16x256xbf16>,
    %214 = vector.extract_strided_slice %199 {offsets = [0, 241], sizes = [16, 15], strides = [1, 1]} : vector<16x256xf32> to vector<16x15xf32>
    %215 = vector.extract_strided_slice %199 {offsets = [0, 0], sizes = [16, 241], strides = [1, 1]} : vector<16x256xf32> to vector<16x241xf32>
    %216 = tpu.concatenate %214, %215 in 1 : vector<16x15xf32>, vector<16x241xf32> -> vector<16x256xf32>
    %c32_127 = arith.constant 32 : index
    %c0_128 = arith.constant 0 : index
    %217 = vector.load %arg2[%c32_127, %c0_128] : memref<144x256xf32, #tpu.memory_space<vmem>>, vector<16x256xf32>
    %218 = arith.mulf %216, %217 : vector<16x256xf32>
    %219 = arith.truncf %218 : vector<16x256xf32> to vector<16x256xbf16>
    %c32_129 = arith.constant 32 : index
    %c0_130 = arith.constant 0 : index
    %220 = vector.load %arg14[%c32_129, %c0_130] : memref<144x256xbf16, #tpu.memory_space<vmem>>, vector<16x256xbf16>
    tpu.vector_store %arg14[%c32_129, %c0_130], %219 {strides = array<i32>} : memref<144x256xbf16, #tpu.memory_space<vmem>>, vector<16x256xbf16>,
    %221 = vector.extract_strided_slice %199 {offsets = [0, 255], sizes = [16, 1], strides = [1, 1]} : vector<16x256xf32> to vector<16x1xf32>
    %222 = vector.extract_strided_slice %199 {offsets = [0, 0], sizes = [16, 255], strides = [1, 1]} : vector<16x256xf32> to vector<16x255xf32>
    %223 = tpu.concatenate %221, %222 in 1 : vector<16x1xf32>, vector<16x255xf32> -> vector<16x256xf32>
    %c48_131 = arith.constant 48 : index
    %c0_132 = arith.constant 0 : index
    %224 = vector.load %arg2[%c48_131, %c0_132] : memref<144x256xf32, #tpu.memory_space<vmem>>, vector<16x256xf32>
    %225 = arith.mulf %223, %224 : vector<16x256xf32>
    %226 = arith.truncf %225 : vector<16x256xf32> to vector<16x256xbf16>
    %c48_133 = arith.constant 48 : index
    %c0_134 = arith.constant 0 : index
    %227 = vector.load %arg14[%c48_133, %c0_134] : memref<144x256xbf16, #tpu.memory_space<vmem>>, vector<16x256xbf16>
    tpu.vector_store %arg14[%c48_133, %c0_134], %226 {strides = array<i32>} : memref<144x256xbf16, #tpu.memory_space<vmem>>, vector<16x256xbf16>,
    %228 = arith.truncf %199 : vector<16x256xf32> to vector<16x256xbf16>
    %c64_135 = arith.constant 64 : index
    %c0_136 = arith.constant 0 : index
    %229 = vector.load %arg14[%c64_135, %c0_136] : memref<144x256xbf16, #tpu.memory_space<vmem>>, vector<16x256xbf16>
    tpu.vector_store %arg14[%c64_135, %c0_136], %228 {strides = array<i32>} : memref<144x256xbf16, #tpu.memory_space<vmem>>, vector<16x256xbf16>,
    %230 = vector.extract_strided_slice %199 {offsets = [0, 1], sizes = [16, 255], strides = [1, 1]} : vector<16x256xf32> to vector<16x255xf32>
    %231 = vector.extract_strided_slice %199 {offsets = [0, 0], sizes = [16, 1], strides = [1, 1]} : vector<16x256xf32> to vector<16x1xf32>
    %232 = tpu.concatenate %230, %231 in 1 : vector<16x255xf32>, vector<16x1xf32> -> vector<16x256xf32>
    %c80_137 = arith.constant 80 : index
    %c0_138 = arith.constant 0 : index
    %233 = vector.load %arg2[%c80_137, %c0_138] : memref<144x256xf32, #tpu.memory_space<vmem>>, vector<16x256xf32>
    %234 = arith.mulf %232, %233 : vector<16x256xf32>
    %235 = arith.truncf %234 : vector<16x256xf32> to vector<16x256xbf16>
    %c80_139 = arith.constant 80 : index
    %c0_140 = arith.constant 0 : index
    %236 = vector.load %arg14[%c80_139, %c0_140] : memref<144x256xbf16, #tpu.memory_space<vmem>>, vector<16x256xbf16>
    tpu.vector_store %arg14[%c80_139, %c0_140], %235 {strides = array<i32>} : memref<144x256xbf16, #tpu.memory_space<vmem>>, vector<16x256xbf16>,
    %237 = vector.extract_strided_slice %199 {offsets = [0, 15], sizes = [16, 241], strides = [1, 1]} : vector<16x256xf32> to vector<16x241xf32>
    %238 = vector.extract_strided_slice %199 {offsets = [0, 0], sizes = [16, 15], strides = [1, 1]} : vector<16x256xf32> to vector<16x15xf32>
    %239 = tpu.concatenate %237, %238 in 1 : vector<16x241xf32>, vector<16x15xf32> -> vector<16x256xf32>
    %c96_141 = arith.constant 96 : index
    %c0_142 = arith.constant 0 : index
    %240 = vector.load %arg2[%c96_141, %c0_142] : memref<144x256xf32, #tpu.memory_space<vmem>>, vector<16x256xf32>
    %241 = arith.mulf %239, %240 : vector<16x256xf32>
    %242 = arith.truncf %241 : vector<16x256xf32> to vector<16x256xbf16>
    %c96_143 = arith.constant 96 : index
    %c0_144 = arith.constant 0 : index
    %243 = vector.load %arg14[%c96_143, %c0_144] : memref<144x256xbf16, #tpu.memory_space<vmem>>, vector<16x256xbf16>
    tpu.vector_store %arg14[%c96_143, %c0_144], %242 {strides = array<i32>} : memref<144x256xbf16, #tpu.memory_space<vmem>>, vector<16x256xbf16>,
    %244 = vector.extract_strided_slice %199 {offsets = [0, 16], sizes = [16, 240], strides = [1, 1]} : vector<16x256xf32> to vector<16x240xf32>
    %245 = vector.extract_strided_slice %199 {offsets = [0, 0], sizes = [16, 16], strides = [1, 1]} : vector<16x256xf32> to vector<16x16xf32>
    %246 = tpu.concatenate %244, %245 in 1 : vector<16x240xf32>, vector<16x16xf32> -> vector<16x256xf32>
    %c112_145 = arith.constant 112 : index
    %c0_146 = arith.constant 0 : index
    %247 = vector.load %arg2[%c112_145, %c0_146] : memref<144x256xf32, #tpu.memory_space<vmem>>, vector<16x256xf32>
    %248 = arith.mulf %246, %247 : vector<16x256xf32>
    %249 = arith.truncf %248 : vector<16x256xf32> to vector<16x256xbf16>
    %c112_147 = arith.constant 112 : index
    %c0_148 = arith.constant 0 : index
    %250 = vector.load %arg14[%c112_147, %c0_148] : memref<144x256xbf16, #tpu.memory_space<vmem>>, vector<16x256xbf16>
    tpu.vector_store %arg14[%c112_147, %c0_148], %249 {strides = array<i32>} : memref<144x256xbf16, #tpu.memory_space<vmem>>, vector<16x256xbf16>,
    %251 = vector.extract_strided_slice %199 {offsets = [0, 17], sizes = [16, 239], strides = [1, 1]} : vector<16x256xf32> to vector<16x239xf32>
    %252 = vector.extract_strided_slice %199 {offsets = [0, 0], sizes = [16, 17], strides = [1, 1]} : vector<16x256xf32> to vector<16x17xf32>
    %253 = tpu.concatenate %251, %252 in 1 : vector<16x239xf32>, vector<16x17xf32> -> vector<16x256xf32>
    %c128_149 = arith.constant 128 : index
    %c0_150 = arith.constant 0 : index
    %254 = vector.load %arg2[%c128_149, %c0_150] : memref<144x256xf32, #tpu.memory_space<vmem>>, vector<16x256xf32>
    %255 = arith.mulf %253, %254 : vector<16x256xf32>
    %256 = arith.truncf %255 : vector<16x256xf32> to vector<16x256xbf16>
    %c128_151 = arith.constant 128 : index
    %c0_152 = arith.constant 0 : index
    %257 = vector.load %arg14[%c128_151, %c0_152] : memref<144x256xbf16, #tpu.memory_space<vmem>>, vector<16x256xbf16>
    tpu.vector_store %arg14[%c128_151, %c0_152], %256 {strides = array<i32>} : memref<144x256xbf16, #tpu.memory_space<vmem>>, vector<16x256xbf16>,
    %c0_153 = arith.constant 0 : index
    %c0_154 = arith.constant 0 : index
    %258 = vector.load %arg9[%c0_153, %c0_154] : memref<16x144xbf16, #tpu.memory_space<vmem>>, vector<16x144xbf16>
    %c0_155 = arith.constant 0 : index
    %c0_156 = arith.constant 0 : index
    %259 = vector.load %arg14[%c0_155, %c0_156] : memref<144x256xbf16, #tpu.memory_space<vmem>>, vector<144x256xbf16>
    %cst_157 = arith.constant dense<0.000000e+00> : vector<16x256xf32>
    %260 = tpu.matmul %258, %259, %cst_157 {dimension_numbers = #tpu.dot_dimension_numbers<[1], [0], [0], [1], [0, 0, 1, 1], [], []>} : vector<16x144xbf16>, vector<144x256xbf16>, vector<16x256xf32> -> vector<16x256xf32>
    %c0_158 = arith.constant 0 : index
    %c0_159 = arith.constant 0 : index
    %261 = vector.load %arg10[%c0_158, %c0_159] : memref<16x1xf32, #tpu.memory_space<vmem>>, vector<16x1xf32>
    %262 = vector.broadcast %261 : vector<16x1xf32> to vector<16x256xf32>
    %263 = arith.addf %260, %262 : vector<16x256xf32>
    %cst_160 = arith.constant 0.000000e+00 : f32
    %264 = vector.broadcast %cst_160 : f32 to vector<16x256xf32>
    %265 = arith.maximumf %263, %264 : vector<16x256xf32>
    %266 = vector.extract_strided_slice %265 {offsets = [0, 239], sizes = [16, 17], strides = [1, 1]} : vector<16x256xf32> to vector<16x17xf32>
    %267 = vector.extract_strided_slice %265 {offsets = [0, 0], sizes = [16, 239], strides = [1, 1]} : vector<16x256xf32> to vector<16x239xf32>
    %268 = tpu.concatenate %266, %267 in 1 : vector<16x17xf32>, vector<16x239xf32> -> vector<16x256xf32>
    %c0_161 = arith.constant 0 : index
    %c0_162 = arith.constant 0 : index
    %269 = vector.load %arg2[%c0_161, %c0_162] : memref<144x256xf32, #tpu.memory_space<vmem>>, vector<16x256xf32>
    %270 = arith.mulf %268, %269 : vector<16x256xf32>
    %271 = arith.truncf %270 : vector<16x256xf32> to vector<16x256xbf16>
    %c0_163 = arith.constant 0 : index
    %c0_164 = arith.constant 0 : index
    %272 = vector.load %arg14[%c0_163, %c0_164] : memref<144x256xbf16, #tpu.memory_space<vmem>>, vector<16x256xbf16>
    tpu.vector_store %arg14[%c0_163, %c0_164], %271 {strides = array<i32>} : memref<144x256xbf16, #tpu.memory_space<vmem>>, vector<16x256xbf16>,
    %273 = vector.extract_strided_slice %265 {offsets = [0, 240], sizes = [16, 16], strides = [1, 1]} : vector<16x256xf32> to vector<16x16xf32>
    %274 = vector.extract_strided_slice %265 {offsets = [0, 0], sizes = [16, 240], strides = [1, 1]} : vector<16x256xf32> to vector<16x240xf32>
    %275 = tpu.concatenate %273, %274 in 1 : vector<16x16xf32>, vector<16x240xf32> -> vector<16x256xf32>
    %c16_165 = arith.constant 16 : index
    %c0_166 = arith.constant 0 : index
    %276 = vector.load %arg2[%c16_165, %c0_166] : memref<144x256xf32, #tpu.memory_space<vmem>>, vector<16x256xf32>
    %277 = arith.mulf %275, %276 : vector<16x256xf32>
    %278 = arith.truncf %277 : vector<16x256xf32> to vector<16x256xbf16>
    %c16_167 = arith.constant 16 : index
    %c0_168 = arith.constant 0 : index
    %279 = vector.load %arg14[%c16_167, %c0_168] : memref<144x256xbf16, #tpu.memory_space<vmem>>, vector<16x256xbf16>
    tpu.vector_store %arg14[%c16_167, %c0_168], %278 {strides = array<i32>} : memref<144x256xbf16, #tpu.memory_space<vmem>>, vector<16x256xbf16>,
    %280 = vector.extract_strided_slice %265 {offsets = [0, 241], sizes = [16, 15], strides = [1, 1]} : vector<16x256xf32> to vector<16x15xf32>
    %281 = vector.extract_strided_slice %265 {offsets = [0, 0], sizes = [16, 241], strides = [1, 1]} : vector<16x256xf32> to vector<16x241xf32>
    %282 = tpu.concatenate %280, %281 in 1 : vector<16x15xf32>, vector<16x241xf32> -> vector<16x256xf32>
    %c32_169 = arith.constant 32 : index
    %c0_170 = arith.constant 0 : index
    %283 = vector.load %arg2[%c32_169, %c0_170] : memref<144x256xf32, #tpu.memory_space<vmem>>, vector<16x256xf32>
    %284 = arith.mulf %282, %283 : vector<16x256xf32>
    %285 = arith.truncf %284 : vector<16x256xf32> to vector<16x256xbf16>
    %c32_171 = arith.constant 32 : index
    %c0_172 = arith.constant 0 : index
    %286 = vector.load %arg14[%c32_171, %c0_172] : memref<144x256xbf16, #tpu.memory_space<vmem>>, vector<16x256xbf16>
    tpu.vector_store %arg14[%c32_171, %c0_172], %285 {strides = array<i32>} : memref<144x256xbf16, #tpu.memory_space<vmem>>, vector<16x256xbf16>,
    %287 = vector.extract_strided_slice %265 {offsets = [0, 255], sizes = [16, 1], strides = [1, 1]} : vector<16x256xf32> to vector<16x1xf32>
    %288 = vector.extract_strided_slice %265 {offsets = [0, 0], sizes = [16, 255], strides = [1, 1]} : vector<16x256xf32> to vector<16x255xf32>
    %289 = tpu.concatenate %287, %288 in 1 : vector<16x1xf32>, vector<16x255xf32> -> vector<16x256xf32>
    %c48_173 = arith.constant 48 : index
    %c0_174 = arith.constant 0 : index
    %290 = vector.load %arg2[%c48_173, %c0_174] : memref<144x256xf32, #tpu.memory_space<vmem>>, vector<16x256xf32>
    %291 = arith.mulf %289, %290 : vector<16x256xf32>
    %292 = arith.truncf %291 : vector<16x256xf32> to vector<16x256xbf16>
    %c48_175 = arith.constant 48 : index
    %c0_176 = arith.constant 0 : index
    %293 = vector.load %arg14[%c48_175, %c0_176] : memref<144x256xbf16, #tpu.memory_space<vmem>>, vector<16x256xbf16>
    tpu.vector_store %arg14[%c48_175, %c0_176], %292 {strides = array<i32>} : memref<144x256xbf16, #tpu.memory_space<vmem>>, vector<16x256xbf16>,
    %294 = arith.truncf %265 : vector<16x256xf32> to vector<16x256xbf16>
    %c64_177 = arith.constant 64 : index
    %c0_178 = arith.constant 0 : index
    %295 = vector.load %arg14[%c64_177, %c0_178] : memref<144x256xbf16, #tpu.memory_space<vmem>>, vector<16x256xbf16>
    tpu.vector_store %arg14[%c64_177, %c0_178], %294 {strides = array<i32>} : memref<144x256xbf16, #tpu.memory_space<vmem>>, vector<16x256xbf16>,
    %296 = vector.extract_strided_slice %265 {offsets = [0, 1], sizes = [16, 255], strides = [1, 1]} : vector<16x256xf32> to vector<16x255xf32>
    %297 = vector.extract_strided_slice %265 {offsets = [0, 0], sizes = [16, 1], strides = [1, 1]} : vector<16x256xf32> to vector<16x1xf32>
    %298 = tpu.concatenate %296, %297 in 1 : vector<16x255xf32>, vector<16x1xf32> -> vector<16x256xf32>
    %c80_179 = arith.constant 80 : index
    %c0_180 = arith.constant 0 : index
    %299 = vector.load %arg2[%c80_179, %c0_180] : memref<144x256xf32, #tpu.memory_space<vmem>>, vector<16x256xf32>
    %300 = arith.mulf %298, %299 : vector<16x256xf32>
    %301 = arith.truncf %300 : vector<16x256xf32> to vector<16x256xbf16>
    %c80_181 = arith.constant 80 : index
    %c0_182 = arith.constant 0 : index
    %302 = vector.load %arg14[%c80_181, %c0_182] : memref<144x256xbf16, #tpu.memory_space<vmem>>, vector<16x256xbf16>
    tpu.vector_store %arg14[%c80_181, %c0_182], %301 {strides = array<i32>} : memref<144x256xbf16, #tpu.memory_space<vmem>>, vector<16x256xbf16>,
    %303 = vector.extract_strided_slice %265 {offsets = [0, 15], sizes = [16, 241], strides = [1, 1]} : vector<16x256xf32> to vector<16x241xf32>
    %304 = vector.extract_strided_slice %265 {offsets = [0, 0], sizes = [16, 15], strides = [1, 1]} : vector<16x256xf32> to vector<16x15xf32>
    %305 = tpu.concatenate %303, %304 in 1 : vector<16x241xf32>, vector<16x15xf32> -> vector<16x256xf32>
    %c96_183 = arith.constant 96 : index
    %c0_184 = arith.constant 0 : index
    %306 = vector.load %arg2[%c96_183, %c0_184] : memref<144x256xf32, #tpu.memory_space<vmem>>, vector<16x256xf32>
    %307 = arith.mulf %305, %306 : vector<16x256xf32>
    %308 = arith.truncf %307 : vector<16x256xf32> to vector<16x256xbf16>
    %c96_185 = arith.constant 96 : index
    %c0_186 = arith.constant 0 : index
    %309 = vector.load %arg14[%c96_185, %c0_186] : memref<144x256xbf16, #tpu.memory_space<vmem>>, vector<16x256xbf16>
    tpu.vector_store %arg14[%c96_185, %c0_186], %308 {strides = array<i32>} : memref<144x256xbf16, #tpu.memory_space<vmem>>, vector<16x256xbf16>,
    %310 = vector.extract_strided_slice %265 {offsets = [0, 16], sizes = [16, 240], strides = [1, 1]} : vector<16x256xf32> to vector<16x240xf32>
    %311 = vector.extract_strided_slice %265 {offsets = [0, 0], sizes = [16, 16], strides = [1, 1]} : vector<16x256xf32> to vector<16x16xf32>
    %312 = tpu.concatenate %310, %311 in 1 : vector<16x240xf32>, vector<16x16xf32> -> vector<16x256xf32>
    %c112_187 = arith.constant 112 : index
    %c0_188 = arith.constant 0 : index
    %313 = vector.load %arg2[%c112_187, %c0_188] : memref<144x256xf32, #tpu.memory_space<vmem>>, vector<16x256xf32>
    %314 = arith.mulf %312, %313 : vector<16x256xf32>
    %315 = arith.truncf %314 : vector<16x256xf32> to vector<16x256xbf16>
    %c112_189 = arith.constant 112 : index
    %c0_190 = arith.constant 0 : index
    %316 = vector.load %arg14[%c112_189, %c0_190] : memref<144x256xbf16, #tpu.memory_space<vmem>>, vector<16x256xbf16>
    tpu.vector_store %arg14[%c112_189, %c0_190], %315 {strides = array<i32>} : memref<144x256xbf16, #tpu.memory_space<vmem>>, vector<16x256xbf16>,
    %317 = vector.extract_strided_slice %265 {offsets = [0, 17], sizes = [16, 239], strides = [1, 1]} : vector<16x256xf32> to vector<16x239xf32>
    %318 = vector.extract_strided_slice %265 {offsets = [0, 0], sizes = [16, 17], strides = [1, 1]} : vector<16x256xf32> to vector<16x17xf32>
    %319 = tpu.concatenate %317, %318 in 1 : vector<16x239xf32>, vector<16x17xf32> -> vector<16x256xf32>
    %c128_191 = arith.constant 128 : index
    %c0_192 = arith.constant 0 : index
    %320 = vector.load %arg2[%c128_191, %c0_192] : memref<144x256xf32, #tpu.memory_space<vmem>>, vector<16x256xf32>
    %321 = arith.mulf %319, %320 : vector<16x256xf32>
    %322 = arith.truncf %321 : vector<16x256xf32> to vector<16x256xbf16>
    %c128_193 = arith.constant 128 : index
    %c0_194 = arith.constant 0 : index
    %323 = vector.load %arg14[%c128_193, %c0_194] : memref<144x256xbf16, #tpu.memory_space<vmem>>, vector<16x256xbf16>
    tpu.vector_store %arg14[%c128_193, %c0_194], %322 {strides = array<i32>} : memref<144x256xbf16, #tpu.memory_space<vmem>>, vector<16x256xbf16>,
    %c0_195 = arith.constant 0 : index
    %c0_196 = arith.constant 0 : index
    %324 = vector.load %arg11[%c0_195, %c0_196] : memref<16x144xbf16, #tpu.memory_space<vmem>>, vector<16x144xbf16>
    %c0_197 = arith.constant 0 : index
    %c0_198 = arith.constant 0 : index
    %325 = vector.load %arg14[%c0_197, %c0_198] : memref<144x256xbf16, #tpu.memory_space<vmem>>, vector<144x256xbf16>
    %cst_199 = arith.constant dense<0.000000e+00> : vector<16x256xf32>
    %326 = tpu.matmul %324, %325, %cst_199 {dimension_numbers = #tpu.dot_dimension_numbers<[1], [0], [0], [1], [0, 0, 1, 1], [], []>} : vector<16x144xbf16>, vector<144x256xbf16>, vector<16x256xf32> -> vector<16x256xf32>
    %c0_200 = arith.constant 0 : index
    %c0_201 = arith.constant 0 : index
    %327 = vector.load %arg12[%c0_200, %c0_201] : memref<16x1xf32, #tpu.memory_space<vmem>>, vector<16x1xf32>
    %328 = vector.broadcast %327 : vector<16x1xf32> to vector<16x256xf32>
    %329 = arith.addf %326, %328 : vector<16x256xf32>
    %330 = vector.shape_cast %329 : vector<16x256xf32> to vector<1x16x256xf32>
    %c0_202 = arith.constant 0 : index
    %c0_203 = arith.constant 0 : index
    %c0_204 = arith.constant 0 : index
    %331 = vector.load %arg13[%c0_202, %c0_203, %c0_204] : memref<1x16x256xf32, #tpu.memory_space<vmem>>, vector<1x16x256xf32>
    tpu.vector_store %arg13[%c0_202, %c0_203, %c0_204], %330 {strides = array<i32>} : memref<1x16x256xf32, #tpu.memory_space<vmem>>, vector<1x16x256xf32>,
    return
  }
  func.func @transform_0(%arg0: i32) -> (i32, i32, i32) {
    %c0_i32 = arith.constant 0 : i32
    %c0_i32_0 = arith.constant 0 : i32
    %c0_i32_1 = arith.constant 0 : i32
    return %arg0, %c0_i32, %c0_i32_0 : i32, i32, i32
  }
  func.func @transform_1(%arg0: i32) -> (i32, i32) {
    %c0_i32 = arith.constant 0 : i32
    %c0_i32_0 = arith.constant 0 : i32
    %c0_i32_1 = arith.constant 0 : i32
    return %c0_i32, %c0_i32_0 : i32, i32
  }
  func.func @transform_2(%arg0: i32) -> (i32, i32) {
    %c0_i32 = arith.constant 0 : i32
    %c0_i32_0 = arith.constant 0 : i32
    %c0_i32_1 = arith.constant 0 : i32
    return %c0_i32, %c0_i32_0 : i32, i32
  }
  func.func @transform_3(%arg0: i32) -> (i32, i32) {
    %c0_i32 = arith.constant 0 : i32
    %c0_i32_0 = arith.constant 0 : i32
    %c0_i32_1 = arith.constant 0 : i32
    return %c0_i32, %c0_i32_0 : i32, i32
  }
  func.func @transform_4(%arg0: i32) -> (i32, i32) {
    %c0_i32 = arith.constant 0 : i32
    %c0_i32_0 = arith.constant 0 : i32
    %c0_i32_1 = arith.constant 0 : i32
    return %c0_i32, %c0_i32_0 : i32, i32
  }
  func.func @transform_5(%arg0: i32) -> (i32, i32) {
    %c0_i32 = arith.constant 0 : i32
    %c0_i32_0 = arith.constant 0 : i32
    %c0_i32_1 = arith.constant 0 : i32
    return %c0_i32, %c0_i32_0 : i32, i32
  }
  func.func @transform_6(%arg0: i32) -> (i32, i32) {
    %c0_i32 = arith.constant 0 : i32
    %c0_i32_0 = arith.constant 0 : i32
    %c0_i32_1 = arith.constant 0 : i32
    return %c0_i32, %c0_i32_0 : i32, i32
  }
  func.func @transform_7(%arg0: i32) -> (i32, i32) {
    %c0_i32 = arith.constant 0 : i32
    %c0_i32_0 = arith.constant 0 : i32
    %c0_i32_1 = arith.constant 0 : i32
    return %c0_i32, %c0_i32_0 : i32, i32
  }
  func.func @transform_8(%arg0: i32) -> (i32, i32) {
    %c0_i32 = arith.constant 0 : i32
    %c0_i32_0 = arith.constant 0 : i32
    %c0_i32_1 = arith.constant 0 : i32
    return %c0_i32, %c0_i32_0 : i32, i32
  }
  func.func @transform_9(%arg0: i32) -> (i32, i32) {
    %c0_i32 = arith.constant 0 : i32
    %c0_i32_0 = arith.constant 0 : i32
    %c0_i32_1 = arith.constant 0 : i32
    return %c0_i32, %c0_i32_0 : i32, i32
  }
  func.func @transform_10(%arg0: i32) -> (i32, i32) {
    %c0_i32 = arith.constant 0 : i32
    %c0_i32_0 = arith.constant 0 : i32
    %c0_i32_1 = arith.constant 0 : i32
    return %c0_i32, %c0_i32_0 : i32, i32
  }
  func.func @transform_11(%arg0: i32) -> (i32, i32) {
    %c0_i32 = arith.constant 0 : i32
    %c0_i32_0 = arith.constant 0 : i32
    %c0_i32_1 = arith.constant 0 : i32
    return %c0_i32, %c0_i32_0 : i32, i32
  }
  func.func @transform_12(%arg0: i32) -> (i32, i32, i32) {
    %c0_i32 = arith.constant 0 : i32
    %c0_i32_0 = arith.constant 0 : i32
    %c0_i32_1 = arith.constant 0 : i32
    return %arg0, %c0_i32, %c0_i32_0 : i32, i32, i32
  }
}

</mosaic_0001>

<llo_original>
// kernel: hbcnn_forward.1
$region0: #{hbcnn_forward.1}
  #allocation0 [shape = 'u32[]', space=smem, size = 0x4, offset = 0x4, fixed_abs, tag = 'smem constant byte address 0x4 - core index']
  #allocation1 [shape = 'u32[144,128]{1,0:T(1,128)}', space=vmem, size = 0x12000, scoped, tag = 'internal scratch']
  #allocation2 [shape = 'bf16[144,256]{1,0:T(16,128)(2,1)}', space=vmem, size = 0x12000, scoped, tag = 'scratch operand']
  %s0 = inlined_call_operand.vmem [shape: f32[2,16,256], index: 0, kind: input, shape index: {}]
  %s1 = inlined_call_operand.vmem [shape: f32[144,256], index: 1, kind: input, shape index: {}]
  %s2 = inlined_call_operand.vmem [shape: bf16[16,144], index: 2, kind: input, shape index: {}]
  %s3 = inlined_call_operand.vmem [shape: f32[16,1], index: 3, kind: input, shape index: {}]
  %s4 = inlined_call_operand.vmem [shape: bf16[16,144], index: 4, kind: input, shape index: {}]
  %s5 = inlined_call_operand.vmem [shape: f32[16,1], index: 5, kind: input, shape index: {}]
  %s6 = inlined_call_operand.vmem [shape: bf16[16,144], index: 6, kind: input, shape index: {}]
  %s7 = inlined_call_operand.vmem [shape: f32[16,1], index: 7, kind: input, shape index: {}]
  %s8 = inlined_call_operand.vmem [shape: bf16[16,144], index: 8, kind: input, shape index: {}]
  %s9 = inlined_call_operand.vmem [shape: f32[16,1], index: 9, kind: input, shape index: {}]
  %s10 = inlined_call_operand.vmem [shape: bf16[16,144], index: 10, kind: input, shape index: {}]
  %s11 = inlined_call_operand.vmem [shape: f32[16,1], index: 11, kind: input, shape index: {}]
  %s12 = inlined_call_operand.vmem [shape: f32[2,16,256], index: 12, kind: output, shape index: {}]
  %s13 = sld [smem:[#allocation0]]
  $region81: #{hbcnn_forward.1} parent=0
    _
  %s15 = ssub.s32 1, %s13
  %s16 = scalar_select 0, %s15, %s13
  loop: start=0, step=1, limit=4
  $region2: #{hbcnn_forward.1} parent=0 // loop_pre_header
    _
  $region3: #{hbcnn_forward.1} parent=0 // loop_header
    %s18 = sphi 0, %s22
    %p19 = scmp.ge.s32.totalorder %s18, 4
    %s28 = sphi 0, %s30
    %s31 = sphi 0, %s28
    %s32 = sphi 0, %s31
    %s48 = sphi 0, %s32
    %s52 = sphi 0, %s52
    %s54 = sphi 0, %s52
    %s55 = sphi 0, %s54
    %s69 = sphi 0, %s55
    %s73 = sphi 0, %s73
    %s75 = sphi 0, %s73
    %s76 = sphi 0, %s75
    %s90 = sphi 0, %s76
    %s94 = sphi 0, %s94
    %s96 = sphi 0, %s94
    %s97 = sphi 0, %s96
    %s111 = sphi 0, %s97
    %s115 = sphi 0, %s115
    %s117 = sphi 0, %s115
    %s118 = sphi 0, %s117
    %s132 = sphi 0, %s118
    %s136 = sphi 0, %s136
    %s138 = sphi 0, %s136
    %s139 = sphi 0, %s138
    %s153 = sphi 0, %s139
    %s157 = sphi 0, %s157
    %s159 = sphi 0, %s157
    %s160 = sphi 0, %s159
    %s174 = sphi 0, %s160
    %s178 = sphi 0, %s178
    %s180 = sphi 0, %s178
    %s181 = sphi 0, %s180
    %s195 = sphi 0, %s181
    %s199 = sphi 0, %s199
    %s201 = sphi 0, %s199
    %s202 = sphi 0, %s201
    %s216 = sphi 0, %s202
    %s220 = sphi 0, %s220
    %s222 = sphi 0, %s220
    %s223 = sphi 0, %s222
    %s237 = sphi 0, %s223
    %s241 = sphi 0, %s241
    %s243 = sphi 0, %s241
    %s244 = sphi 0, %s243
    %s258 = sphi 0, %s244
    %s262 = sphi 0, %s262
    %s264 = sphi 0, %s262
    %s265 = sphi 0, %s264
    %s279 = sphi 0, %s265
    %s285 = sphi 0, %s287
    %s288 = sphi 0, %s285
    %s289 = sphi 0, %s288
    %s305 = sphi 0, %s289
  $region4: #{hbcnn_forward.1} parent=0 // loop_header_branch
    %21 = sbr.rel (%p19) target = $region8
  $region5: #{hbcnn_forward.1} parent=0 // loop_body
    %s23 = ssub.s32 %s18, 1
    %s24 = ssub.s32 %s18, 2
    %s25 = sadd.s32 %s18, 1
    %s26 = ssub.s32 %s18, %s25
    %p27 = scmp.eq.s32.totalorder %s26, 0
    %s29 = sadd.s32 %s28, 1
    %s30 = scalar_select %p27, %s28, %s29
    %p33 = pneg %p27
    %p34 = scmp.eq.s32.totalorder %s18, 1
    %p35 = por %p33, %p34
    %p36 = scmp.ne.s32.totalorder %s28, %s31
    %p37 = scmp.eq.s32.totalorder %s18, 0
    %p38 = por %p36, %p37
    %p39 = scmp.ne.s32.totalorder %s28, %s31
    %p40 = scmp.eq.s32.totalorder %s23, 1
    %p41 = por %p39, %p40
    %p42 = scmp.ne.s32.totalorder %s31, %s32
    %p43 = scmp.eq.s32.totalorder %s23, 0
    %p44 = por %p42, %p43
    %p45 = scmp.ne.s32.totalorder %s31, %s32
    %p46 = scmp.eq.s32.totalorder %s24, 1
    %p47 = por %p45, %p46
    %p49 = scmp.ne.s32.totalorder %s32, %s48
    %p50 = scmp.eq.s32.totalorder %s24, 0
    %p51 = por %p49, %p50
    %s53 = sadd.s32 %s52, 1
    %p56 = scmp.eq.s32.totalorder %s18, 1
    %p57 = scmp.ne.s32.totalorder %s52, %s54
    %p58 = scmp.eq.s32.totalorder %s18, 0
    %p59 = por %p57, %p58
    %p60 = scmp.ne.s32.totalorder %s52, %s54
    %p61 = scmp.eq.s32.totalorder %s23, 1
    %p62 = por %p60, %p61
    %p63 = scmp.ne.s32.totalorder %s54, %s55
    %p64 = scmp.eq.s32.totalorder %s23, 0
    %p65 = por %p63, %p64
    %p66 = scmp.ne.s32.totalorder %s54, %s55
    %p67 = scmp.eq.s32.totalorder %s24, 1
    %p68 = por %p66, %p67
    %p70 = scmp.ne.s32.totalorder %s55, %s69
    %p71 = scmp.eq.s32.totalorder %s24, 0
    %p72 = por %p70, %p71
    %s74 = sadd.s32 %s73, 1
    %p77 = scmp.eq.s32.totalorder %s18, 1
    %p78 = scmp.ne.s32.totalorder %s73, %s75
    %p79 = scmp.eq.s32.totalorder %s18, 0
    %p80 = por %p78, %p79
    %p81 = scmp.ne.s32.totalorder %s73, %s75
    %p82 = scmp.eq.s32.totalorder %s23, 1
    %p83 = por %p81, %p82
    %p84 = scmp.ne.s32.totalorder %s75, %s76
    %p85 = scmp.eq.s32.totalorder %s23, 0
    %p86 = por %p84, %p85
    %p87 = scmp.ne.s32.totalorder %s75, %s76
    %p88 = scmp.eq.s32.totalorder %s24, 1
    %p89 = por %p87, %p88
    %p91 = scmp.ne.s32.totalorder %s76, %s90
    %p92 = scmp.eq.s32.totalorder %s24, 0
    %p93 = por %p91, %p92
    %s95 = sadd.s32 %s94, 1
    %p98 = scmp.eq.s32.totalorder %s18, 1
    %p99 = scmp.ne.s32.totalorder %s94, %s96
    %p100 = scmp.eq.s32.totalorder %s18, 0
    %p101 = por %p99, %p100
    %p102 = scmp.ne.s32.totalorder %s94, %s96
    %p103 = scmp.eq.s32.totalorder %s23, 1
    %p104 = por %p102, %p103
    %p105 = scmp.ne.s32.totalorder %s96, %s97
    %p106 = scmp.eq.s32.totalorder %s23, 0
    %p107 = por %p105, %p106
    %p108 = scmp.ne.s32.totalorder %s96, %s97
    %p109 = scmp.eq.s32.totalorder %s24, 1
    %p110 = por %p108, %p109
    %p112 = scmp.ne.s32.totalorder %s97, %s111
    %p113 = scmp.eq.s32.totalorder %s24, 0
    %p114 = por %p112, %p113
    %s116 = sadd.s32 %s115, 1
    %p119 = scmp.eq.s32.totalorder %s18, 1
    %p120 = scmp.ne.s32.totalorder %s115, %s117
    %p121 = scmp.eq.s32.totalorder %s18, 0
    %p122 = por %p120, %p121
    %p123 = scmp.ne.s32.totalorder %s115, %s117
    %p124 = scmp.eq.s32.totalorder %s23, 1
    %p125 = por %p123, %p124
    %p126 = scmp.ne.s32.totalorder %s117, %s118
    %p127 = scmp.eq.s32.totalorder %s23, 0
    %p128 = por %p126, %p127
    %p129 = scmp.ne.s32.totalorder %s117, %s118
    %p130 = scmp.eq.s32.totalorder %s24, 1
    %p131 = por %p129, %p130
    %p133 = scmp.ne.s32.totalorder %s118, %s132
    %p134 = scmp.eq.s32.totalorder %s24, 0
    %p135 = por %p133, %p134
    %s137 = sadd.s32 %s136, 1
    %p140 = scmp.eq.s32.totalorder %s18, 1
    %p141 = scmp.ne.s32.totalorder %s136, %s138
    %p142 = scmp.eq.s32.totalorder %s18, 0
    %p143 = por %p141, %p142
    %p144 = scmp.ne.s32.totalorder %s136, %s138
    %p145 = scmp.eq.s32.totalorder %s23, 1
    %p146 = por %p144, %p145
    %p147 = scmp.ne.s32.totalorder %s138, %s139
    %p148 = scmp.eq.s32.totalorder %s23, 0
    %p149 = por %p147, %p148
    %p150 = scmp.ne.s32.totalorder %s138, %s139
    %p151 = scmp.eq.s32.totalorder %s24, 1
    %p152 = por %p150, %p151
    %p154 = scmp.ne.s32.totalorder %s139, %s153
    %p155 = scmp.eq.s32.totalorder %s24, 0
    %p156 = por %p154, %p155
    %s158 = sadd.s32 %s157, 1
    %p161 = scmp.eq.s32.totalorder %s18, 1
    %p162 = scmp.ne.s32.totalorder %s157, %s159
    %p163 = scmp.eq.s32.totalorder %s18, 0
    %p164 = por %p162, %p163
    %p165 = scmp.ne.s32.totalorder %s157, %s159
    %p166 = scmp.eq.s32.totalorder %s23, 1
    %p167 = por %p165, %p166
    %p168 = scmp.ne.s32.totalorder %s159, %s160
    %p169 = scmp.eq.s32.totalorder %s23, 0
    %p170 = por %p168, %p169
    %p171 = scmp.ne.s32.totalorder %s159, %s160
    %p172 = scmp.eq.s32.totalorder %s24, 1
    %p173 = por %p171, %p172
    %p175 = scmp.ne.s32.totalorder %s160, %s174
    %p176 = scmp.eq.s32.totalorder %s24, 0
    %p177 = por %p175, %p176
    %s179 = sadd.s32 %s178, 1
    %p182 = scmp.eq.s32.totalorder %s18, 1
    %p183 = scmp.ne.s32.totalorder %s178, %s180
    %p184 = scmp.eq.s32.totalorder %s18, 0
    %p185 = por %p183, %p184
    %p186 = scmp.ne.s32.totalorder %s178, %s180
    %p187 = scmp.eq.s32.totalorder %s23, 1
    %p188 = por %p186, %p187
    %p189 = scmp.ne.s32.totalorder %s180, %s181
    %p190 = scmp.eq.s32.totalorder %s23, 0
    %p191 = por %p189, %p190
    %p192 = scmp.ne.s32.totalorder %s180, %s181
    %p193 = scmp.eq.s32.totalorder %s24, 1
    %p194 = por %p192, %p193
    %p196 = scmp.ne.s32.totalorder %s181, %s195
    %p197 = scmp.eq.s32.totalorder %s24, 0
    %p198 = por %p196, %p197
    %s200 = sadd.s32 %s199, 1
    %p203 = scmp.eq.s32.totalorder %s18, 1
    %p204 = scmp.ne.s32.totalorder %s199, %s201
    %p205 = scmp.eq.s32.totalorder %s18, 0
    %p206 = por %p204, %p205
    %p207 = scmp.ne.s32.totalorder %s199, %s201
    %p208 = scmp.eq.s32.totalorder %s23, 1
    %p209 = por %p207, %p208
    %p210 = scmp.ne.s32.totalorder %s201, %s202
    %p211 = scmp.eq.s32.totalorder %s23, 0
    %p212 = por %p210, %p211
    %p213 = scmp.ne.s32.totalorder %s201, %s202
    %p214 = scmp.eq.s32.totalorder %s24, 1
    %p215 = por %p213, %p214
    %p217 = scmp.ne.s32.totalorder %s202, %s216
    %p218 = scmp.eq.s32.totalorder %s24, 0
    %p219 = por %p217, %p218
    %s221 = sadd.s32 %s220, 1
    %p224 = scmp.eq.s32.totalorder %s18, 1
    %p225 = scmp.ne.s32.totalorder %s220, %s222
    %p226 = scmp.eq.s32.totalorder %s18, 0
    %p227 = por %p225, %p226
    %p228 = scmp.ne.s32.totalorder %s220, %s222
    %p229 = scmp.eq.s32.totalorder %s23, 1
    %p230 = por %p228, %p229
    %p231 = scmp.ne.s32.totalorder %s222, %s223
    %p232 = scmp.eq.s32.totalorder %s23, 0
    %p233 = por %p231, %p232
    %p234 = scmp.ne.s32.totalorder %s222, %s223
    %p235 = scmp.eq.s32.totalorder %s24, 1
    %p236 = por %p234, %p235
    %p238 = scmp.ne.s32.totalorder %s223, %s237
    %p239 = scmp.eq.s32.totalorder %s24, 0
    %p240 = por %p238, %p239
    %s242 = sadd.s32 %s241, 1
    %p245 = scmp.eq.s32.totalorder %s18, 1
    %p246 = scmp.ne.s32.totalorder %s241, %s243
    %p247 = scmp.eq.s32.totalorder %s18, 0
    %p248 = por %p246, %p247
    %p249 = scmp.ne.s32.totalorder %s241, %s243
    %p250 = scmp.eq.s32.totalorder %s23, 1
    %p251 = por %p249, %p250
    %p252 = scmp.ne.s32.totalorder %s243, %s244
    %p253 = scmp.eq.s32.totalorder %s23, 0
    %p254 = por %p252, %p253
    %p255 = scmp.ne.s32.totalorder %s243, %s244
    %p256 = scmp.eq.s32.totalorder %s24, 1
    %p257 = por %p255, %p256
    %p259 = scmp.ne.s32.totalorder %s244, %s258
    %p260 = scmp.eq.s32.totalorder %s24, 0
    %p261 = por %p259, %p260
    %s263 = sadd.s32 %s262, 1
    %p266 = scmp.eq.s32.totalorder %s18, 1
    %p267 = scmp.ne.s32.totalorder %s262, %s264
    %p268 = scmp.eq.s32.totalorder %s18, 0
    %p269 = por %p267, %p268
    %p270 = scmp.ne.s32.totalorder %s262, %s264
    %p271 = scmp.eq.s32.totalorder %s23, 1
    %p272 = por %p270, %p271
    %p273 = scmp.ne.s32.totalorder %s264, %s265
    %p274 = scmp.eq.s32.totalorder %s23, 0
    %p275 = por %p273, %p274
    %p276 = scmp.ne.s32.totalorder %s264, %s265
    %p277 = scmp.eq.s32.totalorder %s24, 1
    %p278 = por %p276, %p277
    %p280 = scmp.ne.s32.totalorder %s265, %s279
    %p281 = scmp.eq.s32.totalorder %s24, 0
    %p282 = por %p280, %p281
    %s283 = ssub.s32 %s18, %s25
    %p284 = scmp.eq.s32.totalorder %s283, 0
    %s286 = sadd.s32 %s285, 1
    %s287 = scalar_select %p284, %s285, %s286
    %p290 = pneg %p284
    %p291 = scmp.eq.s32.totalorder %s18, 1
    %p292 = por %p290, %p291
    %p293 = scmp.ne.s32.totalorder %s285, %s288
    %p294 = scmp.eq.s32.totalorder %s18, 0
    %p295 = por %p293, %p294
    %p296 = scmp.ne.s32.totalorder %s285, %s288
    %p297 = scmp.eq.s32.totalorder %s23, 1
    %p298 = por %p296, %p297
    %p299 = scmp.ne.s32.totalorder %s288, %s289
    %p300 = scmp.eq.s32.totalorder %s23, 0
    %p301 = por %p299, %p300
    %p302 = scmp.ne.s32.totalorder %s288, %s289
    %p303 = scmp.eq.s32.totalorder %s24, 1
    %p304 = por %p302, %p303
    %p306 = scmp.ne.s32.totalorder %s289, %s305
    %p307 = scmp.eq.s32.totalorder %s24, 0
    %p308 = por %p306, %p307
    %p309 = scmp.le.s32.totalorder 1, %s18
    %p310 = scmp.lt.s32.totalorder %s18, 3
    %p311 = pnand %p309, %p310
    %p312 = pneg %p311
    // Predicated region
    $region9: #{hbcnn_forward.1} parent=5 // pred_check
      _
    $region10: #{hbcnn_forward.1} parent=5 // pred_check_branch
      %314 = sbr.rel (%p311) target = $region12
    $region11: #{hbcnn_forward.1} parent=5 // pred_region
      %s315 = ssub.s32 %s18, 1
      // Predicated region
      $region13: #{hbcnn_forward.1} parent=11 // pred_check
        %p316 = pneg %p65
      $region14: #{hbcnn_forward.1} parent=11 // pred_check_branch
        %318 = sbr.rel (%p316) target = $region16
      $region15: #{hbcnn_forward.1} parent=11 // pred_region
        _
      $region16: #{hbcnn_forward.1} parent=11 // pred_fallthru
        _
      // Predicated region
      $region17: #{hbcnn_forward.1} parent=11 // pred_check
        %p319 = pneg %p86
      $region18: #{hbcnn_forward.1} parent=11 // pred_check_branch
        %321 = sbr.rel (%p319) target = $region20
      $region19: #{hbcnn_forward.1} parent=11 // pred_region
        _
      $region20: #{hbcnn_forward.1} parent=11 // pred_fallthru
        _
      // Predicated region
      $region21: #{hbcnn_forward.1} parent=11 // pred_check
        %p322 = pneg %p107
      $region22: #{hbcnn_forward.1} parent=11 // pred_check_branch
        %324 = sbr.rel (%p322) target = $region24
      $region23: #{hbcnn_forward.1} parent=11 // pred_region
        _
      $region24: #{hbcnn_forward.1} parent=11 // pred_fallthru
        _
      // Predicated region
      $region25: #{hbcnn_forward.1} parent=11 // pred_check
        %p325 = pneg %p128
      $region26: #{hbcnn_forward.1} parent=11 // pred_check_branch
        %327 = sbr.rel (%p325) target = $region28
      $region27: #{hbcnn_forward.1} parent=11 // pred_region
        _
      $region28: #{hbcnn_forward.1} parent=11 // pred_fallthru
        _
      // Predicated region
      $region29: #{hbcnn_forward.1} parent=11 // pred_check
        %p328 = pneg %p149
      $region30: #{hbcnn_forward.1} parent=11 // pred_check_branch
        %330 = sbr.rel (%p328) target = $region32
      $region31: #{hbcnn_forward.1} parent=11 // pred_region
        _
      $region32: #{hbcnn_forward.1} parent=11 // pred_fallthru
        _
      // Predicated region
      $region33: #{hbcnn_forward.1} parent=11 // pred_check
        %p331 = pneg %p170
      $region34: #{hbcnn_forward.1} parent=11 // pred_check_branch
        %333 = sbr.rel (%p331) target = $region36
      $region35: #{hbcnn_forward.1} parent=11 // pred_region
        _
      $region36: #{hbcnn_forward.1} parent=11 // pred_fallthru
        _
      // Predicated region
      $region37: #{hbcnn_forward.1} parent=11 // pred_check
        %p334 = pneg %p191
      $region38: #{hbcnn_forward.1} parent=11 // pred_check_branch
        %336 = sbr.rel (%p334) target = $region40
      $region39: #{hbcnn_forward.1} parent=11 // pred_region
        _
      $region40: #{hbcnn_forward.1} parent=11 // pred_fallthru
        _
      // Predicated region
      $region41: #{hbcnn_forward.1} parent=11 // pred_check
        %p337 = pneg %p212
      $region42: #{hbcnn_forward.1} parent=11 // pred_check_branch
        %339 = sbr.rel (%p337) target = $region44
      $region43: #{hbcnn_forward.1} parent=11 // pred_region
        _
      $region44: #{hbcnn_forward.1} parent=11 // pred_fallthru
        _
      // Predicated region
      $region45: #{hbcnn_forward.1} parent=11 // pred_check
        %p340 = pneg %p233
      $region46: #{hbcnn_forward.1} parent=11 // pred_check_branch
        %342 = sbr.rel (%p340) target = $region48
      $region47: #{hbcnn_forward.1} parent=11 // pred_region
        _
      $region48: #{hbcnn_forward.1} parent=11 // pred_fallthru
        _
      // Predicated region
      $region49: #{hbcnn_forward.1} parent=11 // pred_check
        %p343 = pneg %p254
      $region50: #{hbcnn_forward.1} parent=11 // pred_check_branch
        %345 = sbr.rel (%p343) target = $region52
      $region51: #{hbcnn_forward.1} parent=11 // pred_region
        _
      $region52: #{hbcnn_forward.1} parent=11 // pred_fallthru
        _
      // Predicated region
      $region53: #{hbcnn_forward.1} parent=11 // pred_check
        %p346 = pneg %p275
      $region54: #{hbcnn_forward.1} parent=11 // pred_check_branch
        %348 = sbr.rel (%p346) target = $region56
      $region55: #{hbcnn_forward.1} parent=11 // pred_region
        _
      $region56: #{hbcnn_forward.1} parent=11 // pred_fallthru
        _
    $region12: #{hbcnn_forward.1} parent=5 // pred_fallthru
      _
    %p349 = scmp.lt.s32.totalorder %s18, 2
    // Predicated region
    $region57: #{hbcnn_forward.1} parent=5 // pred_check
      %p350 = pneg %p349
    $region58: #{hbcnn_forward.1} parent=5 // pred_check_branch
      %352 = sbr.rel (%p350) target = $region60
    $region59: #{hbcnn_forward.1} parent=5 // pred_region
      // Predicated region
      $region61: #{hbcnn_forward.1} parent=59 // pred_check
        %p353 = pneg %p38
      $region62: #{hbcnn_forward.1} parent=59 // pred_check_branch
        %355 = sbr.rel (%p353) target = $region64
      $region63: #{hbcnn_forward.1} parent=59 // pred_region
        %p356 = scmp.lt.s32.totalorder %s18, 1
        %s357 = scalar_select %p356, %s18, 1
        %s358 = smul.addr %s357, 4
        %s359 = smul.addr %s358, 8
        %s360 = scalar_lea.vmem %s0, %s359
      $region64: #{hbcnn_forward.1} parent=59 // pred_fallthru
        _
    $region60: #{hbcnn_forward.1} parent=5 // pred_fallthru
      _
    %p361 = scmp.le.s32.totalorder 1, %s18
    %p362 = scmp.lt.s32.totalorder %s18, 3
    %p363 = pnand %p361, %p362
    %p364 = pneg %p363
    // Predicated region
    $region65: #{hbcnn_forward.1} parent=5 // pred_check
      _
    $region66: #{hbcnn_forward.1} parent=5 // pred_check_branch
      %366 = sbr.rel (%p363) target = $region68
    $region67: #{hbcnn_forward.1} parent=5 // pred_region
      %s367 = ssub.s32 %s18, 1
      %p368 = scmp.lt.s32.totalorder %s23, 1
      %s369 = scalar_select %p368, %s23, 1
      %s370 = smul.addr %s369, 4
      %s371 = smul.addr %s370, 8
      %s372 = scalar_lea.vmem %s0, %s371
      %p373 = pneg %p44
      %p374 = pneg %p41
      %p375 = pneg %p65
      %p376 = pneg %p62
      %p377 = pneg %p86
      %p378 = pneg %p83
      %p379 = pneg %p107
      %p380 = pneg %p104
      %p381 = pneg %p128
      %p382 = pneg %p125
      %p383 = pneg %p149
      %p384 = pneg %p146
      %p385 = pneg %p170
      %p386 = pneg %p167
      %p387 = pneg %p191
      %p388 = pneg %p188
      %p389 = pneg %p212
      %p390 = pneg %p209
      %p391 = pneg %p233
      %p392 = pneg %p230
      %p393 = pneg %p254
      %p394 = pneg %p251
      %p395 = pneg %p275
      %p396 = pneg %p272
      %p397 = pneg %p301
      %p398 = pneg %p298
      %p399 = scmp.lt.s32.totalorder %s23, 1
      %s400 = scalar_select %p399, %s23, 1
      %s401 = smul.addr %s400, 4
      %s402 = smul.addr %s401, 8
      %s403 = scalar_lea.vmem %s12, %s402
      %p404 = scmp.lt.s32.totalorder %s23, 1
      %s405 = scalar_select %p404, %s23, 1
      %s406 = smul.addr %s405, 4
      %s407 = smul.addr %s406, 8
      %s408 = scalar_lea.vmem %s0, %s407
      %p409 = scmp.lt.s32.totalorder %s23, 1
      %s410 = scalar_select %p409, %s23, 1
      %s411 = smul.addr %s410, 4
      %s412 = smul.addr %s411, 8
      %s413 = scalar_lea.vmem %s12, %s412
      %v415 = vld [vmem:[%s408] sm:$0xff]
      %v416 = vld [vmem:[%s408 + $0x8] sm:$0xff]
      %v417 = vld [vmem:[%s408 + $0x10] sm:$0xff]
      %v418 = vld [vmem:[%s408 + $0x18] sm:$0xff]
      %421 = vrot.lane.b32.xlu0 %v416, 17
      %v422 = vpop.permute.xlu0 %421
      %423 = vrot.lane.b32.xlu0 %v418, 17
      %v424 = vpop.permute.xlu0 %423
      %429 = vrot.lane.b32.xlu0 %v415, 17
      %v430 = vpop.permute.xlu0 %429
      %431 = vrot.lane.b32.xlu0 %v417, 17
      %v432 = vpop.permute.xlu0 %431
      %vm433 = vcmask 138240
      %v434 = vsel %vm433, %v430, %v422
      %v435 = vsel %vm433, %v432, %v424
      %v440 = vsel %vm433, %v422, %v430
      %v441 = vsel %vm433, %v424, %v432
      %v442 = vld [vmem:[%s1] sm:$0xff]
      %v443 = vld [vmem:[%s1 + $0x8] sm:$0xff]
      %v444 = vld [vmem:[%s1 + $0x10] sm:$0xff]
      %v445 = vld [vmem:[%s1 + $0x18] sm:$0xff]
      %v446 = vmul.f32 %v440, %v442
      %v447 = vmul.f32 %v434, %v443
      %v448 = vmul.f32 %v441, %v444
      %v449 = vmul.f32 %v435, %v445
      %v450 = vpack.c.bf16 %v448, %v446
      %v451 = vpack.c.bf16 %v449, %v447
      %452 = vst [vmem:[#allocation2] sm:$0xff] %v450
      %453 = vst [vmem:[#allocation2 + $0x8] sm:$0xff] %v451
      %454 = vrot.lane.b32.xlu0 %v416, 16
      %v455 = vpop.permute.xlu0 %454
      %456 = vrot.lane.b32.xlu0 %v418, 16
      %v457 = vpop.permute.xlu0 %456
      %460 = vrot.lane.b32.xlu0 %v415, 16
      %v461 = vpop.permute.xlu0 %460
      %462 = vrot.lane.b32.xlu0 %v417, 16
      %v463 = vpop.permute.xlu0 %462
      %vm464 = vcmask 130048
      %v465 = vsel %vm464, %v461, %v455
      %v466 = vsel %vm464, %v463, %v457
      %v471 = vsel %vm464, %v455, %v461
      %v472 = vsel %vm464, %v457, %v463
      %v473 = vld [vmem:[%s1 + $0x20] sm:$0xff]
      %v474 = vld [vmem:[%s1 + $0x28] sm:$0xff]
      %v475 = vld [vmem:[%s1 + $0x30] sm:$0xff]
      %v476 = vld [vmem:[%s1 + $0x38] sm:$0xff]
      %v477 = vmul.f32 %v471, %v473
      %v478 = vmul.f32 %v465, %v474
      %v479 = vmul.f32 %v472, %v475
      %v480 = vmul.f32 %v466, %v476
      %v481 = vpack.c.bf16 %v479, %v477
      %v482 = vpack.c.bf16 %v480, %v478
      %483 = vst [vmem:[#allocation2 + $0x10] sm:$0xff] %v481
      %484 = vst [vmem:[#allocation2 + $0x18] sm:$0xff] %v482
      %485 = vrot.lane.b32.xlu0 %v416, 15
      %v486 = vpop.permute.xlu0 %485
      %487 = vrot.lane.b32.xlu0 %v418, 15
      %v488 = vpop.permute.xlu0 %487
      %491 = vrot.lane.b32.xlu0 %v415, 15
      %v492 = vpop.permute.xlu0 %491
      %493 = vrot.lane.b32.xlu0 %v417, 15
      %v494 = vpop.permute.xlu0 %493
      %vm495 = vcmask 121856
      %v496 = vsel %vm495, %v492, %v486
      %v497 = vsel %vm495, %v494, %v488
      %v502 = vsel %vm495, %v486, %v492
      %v503 = vsel %vm495, %v488, %v494
      %v504 = vld [vmem:[%s1 + $0x40] sm:$0xff]
      %v505 = vld [vmem:[%s1 + $0x48] sm:$0xff]
      %v506 = vld [vmem:[%s1 + $0x50] sm:$0xff]
      %v507 = vld [vmem:[%s1 + $0x58] sm:$0xff]
      %v508 = vmul.f32 %v502, %v504
      %v509 = vmul.f32 %v496, %v505
      %v510 = vmul.f32 %v503, %v506
      %v511 = vmul.f32 %v497, %v507
      %v512 = vpack.c.bf16 %v510, %v508
      %v513 = vpack.c.bf16 %v511, %v509
      %514 = vst [vmem:[#allocation2 + $0x20] sm:$0xff] %v512
      %515 = vst [vmem:[#allocation2 + $0x28] sm:$0xff] %v513
      %516 = vrot.lane.b32.xlu0 %v416, 1
      %v517 = vpop.permute.xlu0 %516
      %518 = vrot.lane.b32.xlu0 %v418, 1
      %v519 = vpop.permute.xlu0 %518
      %522 = vrot.lane.b32.xlu0 %v415, 1
      %v523 = vpop.permute.xlu0 %522
      %524 = vrot.lane.b32.xlu0 %v417, 1
      %v525 = vpop.permute.xlu0 %524
      %vm526 = vcmask 7168
      %v527 = vsel %vm526, %v523, %v517
      %v528 = vsel %vm526, %v525, %v519
      %v533 = vsel %vm526, %v517, %v523
      %v534 = vsel %vm526, %v519, %v525
      %v535 = vld [vmem:[%s1 + $0x60] sm:$0xff]
      %v536 = vld [vmem:[%s1 + $0x68] sm:$0xff]
      %v537 = vld [vmem:[%s1 + $0x70] sm:$0xff]
      %v538 = vld [vmem:[%s1 + $0x78] sm:$0xff]
      %v539 = vmul.f32 %v533, %v535
      %v540 = vmul.f32 %v527, %v536
      %v541 = vmul.f32 %v534, %v537
      %v542 = vmul.f32 %v528, %v538
      %v543 = vpack.c.bf16 %v541, %v539
      %v544 = vpack.c.bf16 %v542, %v540
      %545 = vst [vmem:[#allocation2 + $0x30] sm:$0xff] %v543
      %546 = vst [vmem:[#allocation2 + $0x38] sm:$0xff] %v544
      %v547 = vpack.c.bf16 %v417, %v415
      %v548 = vpack.c.bf16 %v418, %v416
      %549 = vst [vmem:[#allocation2 + $0x40] sm:$0xff] %v547
      %550 = vst [vmem:[#allocation2 + $0x48] sm:$0xff] %v548
      %551 = vrot.lane.b32.xlu0 %v415, 127
      %v552 = vpop.permute.xlu0 %551
      %553 = vrot.lane.b32.xlu0 %v416, 127
      %v554 = vpop.permute.xlu0 %553
      %555 = vrot.lane.b32.xlu0 %v417, 127
      %v556 = vpop.permute.xlu0 %555
      %557 = vrot.lane.b32.xlu0 %v418, 127
      %v558 = vpop.permute.xlu0 %557
      %vm559 = vcmask 1039360
      %v560 = vsel %vm559, %v552, %v554
      %v561 = vsel %vm559, %v556, %v558
      %v568 = vsel %vm559, %v554, %v552
      %v569 = vsel %vm559, %v558, %v556
      %v570 = vld [vmem:[%s1 + $0xa0] sm:$0xff]
      %v571 = vld [vmem:[%s1 + $0xa8] sm:$0xff]
      %v572 = vld [vmem:[%s1 + $0xb0] sm:$0xff]
      %v573 = vld [vmem:[%s1 + $0xb8] sm:$0xff]
      %v574 = vmul.f32 %v560, %v570
      %v575 = vmul.f32 %v568, %v571
      %v576 = vmul.f32 %v561, %v572
      %v577 = vmul.f32 %v569, %v573
      %v578 = vpack.c.bf16 %v576, %v574
      %v579 = vpack.c.bf16 %v577, %v575
      %580 = vst [vmem:[#allocation2 + $0x50] sm:$0xff] %v578
      %581 = vst [vmem:[#allocation2 + $0x58] sm:$0xff] %v579
      %582 = vrot.lane.b32.xlu0 %v415, 113
      %v583 = vpop.permute.xlu0 %582
      %584 = vrot.lane.b32.xlu0 %v416, 113
      %v585 = vpop.permute.xlu0 %584
      %586 = vrot.lane.b32.xlu0 %v417, 113
      %v587 = vpop.permute.xlu0 %586
      %588 = vrot.lane.b32.xlu0 %v418, 113
      %v589 = vpop.permute.xlu0 %588
      %vm590 = vcmask 924672
      %v591 = vsel %vm590, %v583, %v585
      %v592 = vsel %vm590, %v587, %v589
      %v599 = vsel %vm590, %v585, %v583
      %v600 = vsel %vm590, %v589, %v587
      %v601 = vld [vmem:[%s1 + $0xc0] sm:$0xff]
      %v602 = vld [vmem:[%s1 + $0xc8] sm:$0xff]
      %v603 = vld [vmem:[%s1 + $0xd0] sm:$0xff]
      %v604 = vld [vmem:[%s1 + $0xd8] sm:$0xff]
      %v605 = vmul.f32 %v591, %v601
      %v606 = vmul.f32 %v599, %v602
      %v607 = vmul.f32 %v592, %v603
      %v608 = vmul.f32 %v600, %v604
      %v609 = vpack.c.bf16 %v607, %v605
      %v610 = vpack.c.bf16 %v608, %v606
      %611 = vst [vmem:[#allocation2 + $0x60] sm:$0xff] %v609
      %612 = vst [vmem:[#allocation2 + $0x68] sm:$0xff] %v610
      %613 = vrot.lane.b32.xlu0 %v415, 112
      %v614 = vpop.permute.xlu0 %613
      %615 = vrot.lane.b32.xlu0 %v416, 112
      %v616 = vpop.permute.xlu0 %615
      %617 = vrot.lane.b32.xlu0 %v417, 112
      %v618 = vpop.permute.xlu0 %617
      %619 = vrot.lane.b32.xlu0 %v418, 112
      %v620 = vpop.permute.xlu0 %619
      %vm621 = vcmask 916480
      %v622 = vsel %vm621, %v614, %v616
      %v623 = vsel %vm621, %v618, %v620
      %v630 = vsel %vm621, %v616, %v614
      %v631 = vsel %vm621, %v620, %v618
      %v632 = vld [vmem:[%s1 + $0xe0] sm:$0xff]
      %v633 = vld [vmem:[%s1 + $0xe8] sm:$0xff]
      %v634 = vld [vmem:[%s1 + $0xf0] sm:$0xff]
      %v635 = vld [vmem:[%s1 + $0xf8] sm:$0xff]
      %v636 = vmul.f32 %v622, %v632
      %v637 = vmul.f32 %v630, %v633
      %v638 = vmul.f32 %v623, %v634
      %v639 = vmul.f32 %v631, %v635
      %v640 = vpack.c.bf16 %v638, %v636
      %v641 = vpack.c.bf16 %v639, %v637
      %642 = vst [vmem:[#allocation2 + $0x70] sm:$0xff] %v640
      %643 = vst [vmem:[#allocation2 + $0x78] sm:$0xff] %v641
      %644 = vrot.lane.b32.xlu0 %v415, 111
      %v645 = vpop.permute.xlu0 %644
      %646 = vrot.lane.b32.xlu0 %v416, 111
      %v647 = vpop.permute.xlu0 %646
      %648 = vrot.lane.b32.xlu0 %v417, 111
      %v649 = vpop.permute.xlu0 %648
      %650 = vrot.lane.b32.xlu0 %v418, 111
      %v651 = vpop.permute.xlu0 %650
      %vm652 = vcmask 908288
      %v653 = vsel %vm652, %v645, %v647
      %v654 = vsel %vm652, %v649, %v651
      %v661 = vsel %vm652, %v647, %v645
      %v662 = vsel %vm652, %v651, %v649
      %v663 = vld [vmem:[%s1 + $0x100] sm:$0xff]
      %v664 = vld [vmem:[%s1 + $0x108] sm:$0xff]
      %v665 = vld [vmem:[%s1 + $0x110] sm:$0xff]
      %v666 = vld [vmem:[%s1 + $0x118] sm:$0xff]
      %v667 = vmul.f32 %v653, %v663
      %v668 = vmul.f32 %v661, %v664
      %v669 = vmul.f32 %v654, %v665
      %v670 = vmul.f32 %v662, %v666
      %v671 = vpack.c.bf16 %v669, %v667
      %v672 = vpack.c.bf16 %v670, %v668
      %673 = vst [vmem:[#allocation2 + $0x80] sm:$0xff] %v671
      %674 = vst [vmem:[#allocation2 + $0x88] sm:$0xff] %v672
      %v675 = vld [vmem:[%s2] sm:$0xff]
      %v676 = vld [vmem:[%s2 + $0x8] sm:$0xff]
      %v677 = vld [vmem:[#allocation2] sm:$0xff]
      %v678 = vld [vmem:[#allocation2 + $0x8] sm:$0xff]
      %v679 = vld [vmem:[#allocation2 + $0x10] sm:$0xff]
      %v680 = vld [vmem:[#allocation2 + $0x18] sm:$0xff]
      %v681 = vld [vmem:[#allocation2 + $0x20] sm:$0xff]
      %v682 = vld [vmem:[#allocation2 + $0x28] sm:$0xff]
      %v683 = vld [vmem:[#allocation2 + $0x30] sm:$0xff]
      %v684 = vld [vmem:[#allocation2 + $0x38] sm:$0xff]
      %v685 = vld [vmem:[#allocation2 + $0x40] sm:$0xff]
      %v686 = vld [vmem:[#allocation2 + $0x48] sm:$0xff]
      %v687 = vld [vmem:[#allocation2 + $0x50] sm:$0xff]
      %v688 = vld [vmem:[#allocation2 + $0x58] sm:$0xff]
      %v689 = vld [vmem:[#allocation2 + $0x60] sm:$0xff]
      %v690 = vld [vmem:[#allocation2 + $0x68] sm:$0xff]
      %v691 = vld [vmem:[#allocation2 + $0x70] sm:$0xff]
      %v692 = vld [vmem:[#allocation2 + $0x78] sm:$0xff]
      %v693 = vld [vmem:[#allocation2 + $0x80] sm:$0xff]
      %v694 = vld [vmem:[#allocation2 + $0x88] sm:$0xff]
      %v695 = vld [vmem:[%s3] sm:$0xff]
      %v696 = vld [vmem:[%s3 + $0x8] sm:$0xff]
      %698 = vset.pattern.permute.xlu0 0
      %699 = vperm.xlu0 %698, %v695
      %v700 = vpop.permute.xlu0 %699
      %703 = vset.pattern.permute.xlu0 0
      %704 = vperm.xlu0 %703, %v696
      %v705 = vpop.permute.xlu0 %704
      %v709 = vunpack.c.l.b16 %v675
      %v710 = vunpack.c.h.b16 %v675
      %v711 = vunpack.c.l.b16 %v676
      %v712 = vunpack.c.h.b16 %v676
      %v713 = vpack.c.b16 %v711, %v709
      %v714 = vpack.c.b16 %v712, %v710
      %v717 = vsel %vm464, %v714, 0
      %719 = vmatprep.subr.bf16.mxu0 %v678
      %720 = vmatpush1.bf16.msra.mxu0 %v677
      %721 = vmatprep.subr.bf16.mxu0 %v680
      %722 = vmatpush1.bf16.msra.mxu0 %v679
      %723 = vmatprep.subr.bf16.mxu0 %v682
      %724 = vmatpush1.bf16.msra.mxu0 %v681
      %725 = vmatprep.subr.bf16.mxu0 %v684
      %726 = vmatpush1.bf16.msra.mxu0 %v683
      %727 = vmatprep.subr.bf16.mxu0 %v686
      %728 = vmatpush1.bf16.msra.mxu0 %v685
      %729 = vmatprep.subr.bf16.mxu0 %v688
      %730 = vmatpush1.bf16.msra.mxu0 %v687
      %731 = vmatprep.subr.bf16.mxu0 %v690
      %732 = vmatpush1.bf16.msra.mxu0 %v689
      %733 = vmatprep.subr.bf16.mxu0 %v692
      %734 = vmatpush1.bf16.msra.mxu0 %v691
      %735 = vmatprep.subr.bf16.mxu0 %v694
      %736 = vmatpush1.bf16.msra.mxu0 %v693
      %737 = vmatprep.subr.bf16.mxu0 0
      %738 = vmatpush1.bf16.msra.mxu0 0
      %739 = vmatprep.subr.bf16.mxu0 0
      %740 = vmatpush1.bf16.msra.mxu0 0
      %741 = vmatprep.subr.bf16.mxu0 0
      %742 = vmatpush1.bf16.msra.mxu0 0
      %743 = vmatprep.subr.bf16.mxu0 0
      %744 = vmatpush1.bf16.msra.mxu0 0
      %745 = vmatprep.subr.bf16.mxu0 0
      %746 = vmatpush1.bf16.msra.mxu0 0
      %747 = vmatprep.subr.bf16.mxu0 0
      %748 = vmatpush1.bf16.msra.mxu0 0
      %749 = vmatprep.subr.bf16.mxu0 0
      %750 = vmatpush1.bf16.msra.mxu0 0
      %751 = vmatprep.mubr.bf16.mxu0 %v717
      %752 = vmatmul.mubr.bf16.gmra.mrb[0].mxu0 %v713
      %v753 = vpop.f32.mrb[0].mxu0
      %v754 = vadd.f32 %v700, %v753
      %v755 = vpop.f32.mrb[0].mxu0
      %v756 = vadd.f32 %v700, %v755
      %v757 = vpop.f32.mrb[0].mxu0
      %v758 = vadd.f32 %v705, %v757
      %v759 = vpop.f32.mrb[0].mxu0
      %v760 = vadd.f32 %v705, %v759
      %761 = vdwg.mxu0
      %v762 = vmax.f32 %v754, 0.0
      %v763 = vmax.f32 %v756, 0.0
      %v764 = vmax.f32 %v758, 0.0
      %v765 = vmax.f32 %v760, 0.0
      %768 = vrot.lane.b32.xlu0 %v763, 17
      %v769 = vpop.permute.xlu0 %768
      %770 = vrot.lane.b32.xlu0 %v765, 17
      %v771 = vpop.permute.xlu0 %770
      %776 = vrot.lane.b32.xlu0 %v762, 17
      %v777 = vpop.permute.xlu0 %776
      %778 = vrot.lane.b32.xlu0 %v764, 17
      %v779 = vpop.permute.xlu0 %778
      %v780 = vsel %vm433, %v777, %v769
      %v781 = vsel %vm433, %v779, %v771
      %v786 = vsel %vm433, %v769, %v777
      %v787 = vsel %vm433, %v771, %v779
      %v788 = vld [vmem:[%s1] sm:$0xff]
      %v789 = vld [vmem:[%s1 + $0x8] sm:$0xff]
      %v790 = vld [vmem:[%s1 + $0x10] sm:$0xff]
      %v791 = vld [vmem:[%s1 + $0x18] sm:$0xff]
      %v792 = vmul.f32 %v786, %v788
      %v793 = vmul.f32 %v780, %v789
      %v794 = vmul.f32 %v787, %v790
      %v795 = vmul.f32 %v781, %v791
      %v796 = vpack.c.bf16 %v794, %v792
      %v797 = vpack.c.bf16 %v795, %v793
      %798 = vst [vmem:[#allocation2] sm:$0xff] %v796
      %799 = vst [vmem:[#allocation2 + $0x8] sm:$0xff] %v797
      %800 = vrot.lane.b32.xlu0 %v763, 16
      %v801 = vpop.permute.xlu0 %800
      %802 = vrot.lane.b32.xlu0 %v765, 16
      %v803 = vpop.permute.xlu0 %802
      %806 = vrot.lane.b32.xlu0 %v762, 16
      %v807 = vpop.permute.xlu0 %806
      %808 = vrot.lane.b32.xlu0 %v764, 16
      %v809 = vpop.permute.xlu0 %808
      %v810 = vsel %vm464, %v807, %v801
      %v811 = vsel %vm464, %v809, %v803
      %v816 = vsel %vm464, %v801, %v807
      %v817 = vsel %vm464, %v803, %v809
      %v818 = vld [vmem:[%s1 + $0x20] sm:$0xff]
      %v819 = vld [vmem:[%s1 + $0x28] sm:$0xff]
      %v820 = vld [vmem:[%s1 + $0x30] sm:$0xff]
      %v821 = vld [vmem:[%s1 + $0x38] sm:$0xff]
      %v822 = vmul.f32 %v816, %v818
      %v823 = vmul.f32 %v810, %v819
      %v824 = vmul.f32 %v817, %v820
      %v825 = vmul.f32 %v811, %v821
      %v826 = vpack.c.bf16 %v824, %v822
      %v827 = vpack.c.bf16 %v825, %v823
      %828 = vst [vmem:[#allocation2 + $0x10] sm:$0xff] %v826
      %829 = vst [vmem:[#allocation2 + $0x18] sm:$0xff] %v827
      %830 = vrot.lane.b32.xlu0 %v763, 15
      %v831 = vpop.permute.xlu0 %830
      %832 = vrot.lane.b32.xlu0 %v765, 15
      %v833 = vpop.permute.xlu0 %832
      %836 = vrot.lane.b32.xlu0 %v762, 15
      %v837 = vpop.permute.xlu0 %836
      %838 = vrot.lane.b32.xlu0 %v764, 15
      %v839 = vpop.permute.xlu0 %838
      %v840 = vsel %vm495, %v837, %v831
      %v841 = vsel %vm495, %v839, %v833
      %v846 = vsel %vm495, %v831, %v837
      %v847 = vsel %vm495, %v833, %v839
      %v848 = vld [vmem:[%s1 + $0x40] sm:$0xff]
      %v849 = vld [vmem:[%s1 + $0x48] sm:$0xff]
      %v850 = vld [vmem:[%s1 + $0x50] sm:$0xff]
      %v851 = vld [vmem:[%s1 + $0x58] sm:$0xff]
      %v852 = vmul.f32 %v846, %v848
      %v853 = vmul.f32 %v840, %v849
      %v854 = vmul.f32 %v847, %v850
      %v855 = vmul.f32 %v841, %v851
      %v856 = vpack.c.bf16 %v854, %v852
      %v857 = vpack.c.bf16 %v855, %v853
      %858 = vst [vmem:[#allocation2 + $0x20] sm:$0xff] %v856
      %859 = vst [vmem:[#allocation2 + $0x28] sm:$0xff] %v857
      %860 = vrot.lane.b32.xlu0 %v763, 1
      %v861 = vpop.permute.xlu0 %860
      %862 = vrot.lane.b32.xlu0 %v765, 1
      %v863 = vpop.permute.xlu0 %862
      %866 = vrot.lane.b32.xlu0 %v762, 1
      %v867 = vpop.permute.xlu0 %866
      %868 = vrot.lane.b32.xlu0 %v764, 1
      %v869 = vpop.permute.xlu0 %868
      %v870 = vsel %vm526, %v867, %v861
      %v871 = vsel %vm526, %v869, %v863
      %v876 = vsel %vm526, %v861, %v867
      %v877 = vsel %vm526, %v863, %v869
      %v878 = vld [vmem:[%s1 + $0x60] sm:$0xff]
      %v879 = vld [vmem:[%s1 + $0x68] sm:$0xff]
      %v880 = vld [vmem:[%s1 + $0x70] sm:$0xff]
      %v881 = vld [vmem:[%s1 + $0x78] sm:$0xff]
      %v882 = vmul.f32 %v876, %v878
      %v883 = vmul.f32 %v870, %v879
      %v884 = vmul.f32 %v877, %v880
      %v885 = vmul.f32 %v871, %v881
      %v886 = vpack.c.bf16 %v884, %v882
      %v887 = vpack.c.bf16 %v885, %v883
      %888 = vst [vmem:[#allocation2 + $0x30] sm:$0xff] %v886
      %889 = vst [vmem:[#allocation2 + $0x38] sm:$0xff] %v887
      %v890 = vpack.c.bf16 %v764, %v762
      %v891 = vpack.c.bf16 %v765, %v763
      %892 = vst [vmem:[#allocation2 + $0x40] sm:$0xff] %v890
      %893 = vst [vmem:[#allocation2 + $0x48] sm:$0xff] %v891
      %894 = vrot.lane.b32.xlu0 %v762, 127
      %v895 = vpop.permute.xlu0 %894
      %896 = vrot.lane.b32.xlu0 %v763, 127
      %v897 = vpop.permute.xlu0 %896
      %898 = vrot.lane.b32.xlu0 %v764, 127
      %v899 = vpop.permute.xlu0 %898
      %900 = vrot.lane.b32.xlu0 %v765, 127
      %v901 = vpop.permute.xlu0 %900
      %v902 = vsel %vm559, %v895, %v897
      %v903 = vsel %vm559, %v899, %v901
      %v910 = vsel %vm559, %v897, %v895
      %v911 = vsel %vm559, %v901, %v899
      %v912 = vld [vmem:[%s1 + $0xa0] sm:$0xff]
      %v913 = vld [vmem:[%s1 + $0xa8] sm:$0xff]
      %v914 = vld [vmem:[%s1 + $0xb0] sm:$0xff]
      %v915 = vld [vmem:[%s1 + $0xb8] sm:$0xff]
      %v916 = vmul.f32 %v902, %v912
      %v917 = vmul.f32 %v910, %v913
      %v918 = vmul.f32 %v903, %v914
      %v919 = vmul.f32 %v911, %v915
      %v920 = vpack.c.bf16 %v918, %v916
      %v921 = vpack.c.bf16 %v919, %v917
      %922 = vst [vmem:[#allocation2 + $0x50] sm:$0xff] %v920
      %923 = vst [vmem:[#allocation2 + $0x58] sm:$0xff] %v921
      %924 = vrot.lane.b32.xlu0 %v762, 113
      %v925 = vpop.permute.xlu0 %924
      %926 = vrot.lane.b32.xlu0 %v763, 113
      %v927 = vpop.permute.xlu0 %926
      %928 = vrot.lane.b32.xlu0 %v764, 113
      %v929 = vpop.permute.xlu0 %928
      %930 = vrot.lane.b32.xlu0 %v765, 113
      %v931 = vpop.permute.xlu0 %930
      %v932 = vsel %vm590, %v925, %v927
      %v933 = vsel %vm590, %v929, %v931
      %v940 = vsel %vm590, %v927, %v925
      %v941 = vsel %vm590, %v931, %v929
      %v942 = vld [vmem:[%s1 + $0xc0] sm:$0xff]
      %v943 = vld [vmem:[%s1 + $0xc8] sm:$0xff]
      %v944 = vld [vmem:[%s1 + $0xd0] sm:$0xff]
      %v945 = vld [vmem:[%s1 + $0xd8] sm:$0xff]
      %v946 = vmul.f32 %v932, %v942
      %v947 = vmul.f32 %v940, %v943
      %v948 = vmul.f32 %v933, %v944
      %v949 = vmul.f32 %v941, %v945
      %v950 = vpack.c.bf16 %v948, %v946
      %v951 = vpack.c.bf16 %v949, %v947
      %952 = vst [vmem:[#allocation2 + $0x60] sm:$0xff] %v950
      %953 = vst [vmem:[#allocation2 + $0x68] sm:$0xff] %v951
      %954 = vrot.lane.b32.xlu0 %v762, 112
      %v955 = vpop.permute.xlu0 %954
      %956 = vrot.lane.b32.xlu0 %v763, 112
      %v957 = vpop.permute.xlu0 %956
      %958 = vrot.lane.b32.xlu0 %v764, 112
      %v959 = vpop.permute.xlu0 %958
      %960 = vrot.lane.b32.xlu0 %v765, 112
      %v961 = vpop.permute.xlu0 %960
      %v962 = vsel %vm621, %v955, %v957
      %v963 = vsel %vm621, %v959, %v961
      %v970 = vsel %vm621, %v957, %v955
      %v971 = vsel %vm621, %v961, %v959
      %v972 = vld [vmem:[%s1 + $0xe0] sm:$0xff]
      %v973 = vld [vmem:[%s1 + $0xe8] sm:$0xff]
      %v974 = vld [vmem:[%s1 + $0xf0] sm:$0xff]
      %v975 = vld [vmem:[%s1 + $0xf8] sm:$0xff]
      %v976 = vmul.f32 %v962, %v972
      %v977 = vmul.f32 %v970, %v973
      %v978 = vmul.f32 %v963, %v974
      %v979 = vmul.f32 %v971, %v975
      %v980 = vpack.c.bf16 %v978, %v976
      %v981 = vpack.c.bf16 %v979, %v977
      %982 = vst [vmem:[#allocation2 + $0x70] sm:$0xff] %v980
      %983 = vst [vmem:[#allocation2 + $0x78] sm:$0xff] %v981
      %984 = vrot.lane.b32.xlu0 %v762, 111
      %v985 = vpop.permute.xlu0 %984
      %986 = vrot.lane.b32.xlu0 %v763, 111
      %v987 = vpop.permute.xlu0 %986
      %988 = vrot.lane.b32.xlu0 %v764, 111
      %v989 = vpop.permute.xlu0 %988
      %990 = vrot.lane.b32.xlu0 %v765, 111
      %v991 = vpop.permute.xlu0 %990
      %v992 = vsel %vm652, %v985, %v987
      %v993 = vsel %vm652, %v989, %v991
      %v1000 = vsel %vm652, %v987, %v985
      %v1001 = vsel %vm652, %v991, %v989
      %v1002 = vld [vmem:[%s1 + $0x100] sm:$0xff]
      %v1003 = vld [vmem:[%s1 + $0x108] sm:$0xff]
      %v1004 = vld [vmem:[%s1 + $0x110] sm:$0xff]
      %v1005 = vld [vmem:[%s1 + $0x118] sm:$0xff]
      %v1006 = vmul.f32 %v992, %v1002
      %v1007 = vmul.f32 %v1000, %v1003
      %v1008 = vmul.f32 %v993, %v1004
      %v1009 = vmul.f32 %v1001, %v1005
      %v1010 = vpack.c.bf16 %v1008, %v1006
      %v1011 = vpack.c.bf16 %v1009, %v1007
      %1012 = vst [vmem:[#allocation2 + $0x80] sm:$0xff] %v1010
      %1013 = vst [vmem:[#allocation2 + $0x88] sm:$0xff] %v1011
      %v1014 = vld [vmem:[%s4] sm:$0xff]
      %v1015 = vld [vmem:[%s4 + $0x8] sm:$0xff]
      %v1016 = vld [vmem:[#allocation2] sm:$0xff]
      %v1017 = vld [vmem:[#allocation2 + $0x8] sm:$0xff]
      %v1018 = vld [vmem:[#allocation2 + $0x10] sm:$0xff]
      %v1019 = vld [vmem:[#allocation2 + $0x18] sm:$0xff]
      %v1020 = vld [vmem:[#allocation2 + $0x20] sm:$0xff]
      %v1021 = vld [vmem:[#allocation2 + $0x28] sm:$0xff]
      %v1022 = vld [vmem:[#allocation2 + $0x30] sm:$0xff]
      %v1023 = vld [vmem:[#allocation2 + $0x38] sm:$0xff]
      %v1024 = vld [vmem:[#allocation2 + $0x40] sm:$0xff]
      %v1025 = vld [vmem:[#allocation2 + $0x48] sm:$0xff]
      %v1026 = vld [vmem:[#allocation2 + $0x50] sm:$0xff]
      %v1027 = vld [vmem:[#allocation2 + $0x58] sm:$0xff]
      %v1028 = vld [vmem:[#allocation2 + $0x60] sm:$0xff]
      %v1029 = vld [vmem:[#allocation2 + $0x68] sm:$0xff]
      %v1030 = vld [vmem:[#allocation2 + $0x70] sm:$0xff]
      %v1031 = vld [vmem:[#allocation2 + $0x78] sm:$0xff]
      %v1032 = vld [vmem:[#allocation2 + $0x80] sm:$0xff]
      %v1033 = vld [vmem:[#allocation2 + $0x88] sm:$0xff]
      %v1034 = vld [vmem:[%s5] sm:$0xff]
      %v1035 = vld [vmem:[%s5 + $0x8] sm:$0xff]
      %1037 = vset.pattern.permute.xlu0 0
      %1038 = vperm.xlu0 %1037, %v1034
      %v1039 = vpop.permute.xlu0 %1038
      %1042 = vset.pattern.permute.xlu0 0
      %1043 = vperm.xlu0 %1042, %v1035
      %v1044 = vpop.permute.xlu0 %1043
      %v1048 = vunpack.c.l.b16 %v1014
      %v1049 = vunpack.c.h.b16 %v1014
      %v1050 = vunpack.c.l.b16 %v1015
      %v1051 = vunpack.c.h.b16 %v1015
      %v1052 = vpack.c.b16 %v1050, %v1048
      %v1053 = vpack.c.b16 %v1051, %v1049
      %v1056 = vsel %vm464, %v1053, 0
      %1058 = vmatprep.subr.bf16.mxu0 %v1017
      %1059 = vmatpush1.bf16.msra.mxu0 %v1016
      %1060 = vmatprep.subr.bf16.mxu0 %v1019
      %1061 = vmatpush1.bf16.msra.mxu0 %v1018
      %1062 = vmatprep.subr.bf16.mxu0 %v1021
      %1063 = vmatpush1.bf16.msra.mxu0 %v1020
      %1064 = vmatprep.subr.bf16.mxu0 %v1023
      %1065 = vmatpush1.bf16.msra.mxu0 %v1022
      %1066 = vmatprep.subr.bf16.mxu0 %v1025
      %1067 = vmatpush1.bf16.msra.mxu0 %v1024
      %1068 = vmatprep.subr.bf16.mxu0 %v1027
      %1069 = vmatpush1.bf16.msra.mxu0 %v1026
      %1070 = vmatprep.subr.bf16.mxu0 %v1029
      %1071 = vmatpush1.bf16.msra.mxu0 %v1028
      %1072 = vmatprep.subr.bf16.mxu0 %v1031
      %1073 = vmatpush1.bf16.msra.mxu0 %v1030
      %1074 = vmatprep.subr.bf16.mxu0 %v1033
      %1075 = vmatpush1.bf16.msra.mxu0 %v1032
      %1076 = vmatprep.subr.bf16.mxu0 0
      %1077 = vmatpush1.bf16.msra.mxu0 0
      %1078 = vmatprep.subr.bf16.mxu0 0
      %1079 = vmatpush1.bf16.msra.mxu0 0
      %1080 = vmatprep.subr.bf16.mxu0 0
      %1081 = vmatpush1.bf16.msra.mxu0 0
      %1082 = vmatprep.subr.bf16.mxu0 0
      %1083 = vmatpush1.bf16.msra.mxu0 0
      %1084 = vmatprep.subr.bf16.mxu0 0
      %1085 = vmatpush1.bf16.msra.mxu0 0
      %1086 = vmatprep.subr.bf16.mxu0 0
      %1087 = vmatpush1.bf16.msra.mxu0 0
      %1088 = vmatprep.subr.bf16.mxu0 0
      %1089 = vmatpush1.bf16.msra.mxu0 0
      %1090 = vmatprep.mubr.bf16.mxu0 %v1056
      %1091 = vmatmul.mubr.bf16.gmra.mrb[0].mxu0 %v1052
      %v1092 = vpop.f32.mrb[0].mxu0
      %v1093 = vadd.f32 %v1039, %v1092
      %v1094 = vpop.f32.mrb[0].mxu0
      %v1095 = vadd.f32 %v1039, %v1094
      %v1096 = vpop.f32.mrb[0].mxu0
      %v1097 = vadd.f32 %v1044, %v1096
      %v1098 = vpop.f32.mrb[0].mxu0
      %v1099 = vadd.f32 %v1044, %v1098
      %1100 = vdwg.mxu0
      %v1101 = vmax.f32 %v1093, 0.0
      %v1102 = vmax.f32 %v1095, 0.0
      %v1103 = vmax.f32 %v1097, 0.0
      %v1104 = vmax.f32 %v1099, 0.0
      %1107 = vrot.lane.b32.xlu0 %v1102, 17
      %v1108 = vpop.permute.xlu0 %1107
      %1109 = vrot.lane.b32.xlu0 %v1104, 17
      %v1110 = vpop.permute.xlu0 %1109
      %1115 = vrot.lane.b32.xlu0 %v1101, 17
      %v1116 = vpop.permute.xlu0 %1115
      %1117 = vrot.lane.b32.xlu0 %v1103, 17
      %v1118 = vpop.permute.xlu0 %1117
      %v1119 = vsel %vm433, %v1116, %v1108
      %v1120 = vsel %vm433, %v1118, %v1110
      %v1125 = vsel %vm433, %v1108, %v1116
      %v1126 = vsel %vm433, %v1110, %v1118
      %v1127 = vld [vmem:[%s1] sm:$0xff]
      %v1128 = vld [vmem:[%s1 + $0x8] sm:$0xff]
      %v1129 = vld [vmem:[%s1 + $0x10] sm:$0xff]
      %v1130 = vld [vmem:[%s1 + $0x18] sm:$0xff]
      %v1131 = vmul.f32 %v1125, %v1127
      %v1132 = vmul.f32 %v1119, %v1128
      %v1133 = vmul.f32 %v1126, %v1129
      %v1134 = vmul.f32 %v1120, %v1130
      %v1135 = vpack.c.bf16 %v1133, %v1131
      %v1136 = vpack.c.bf16 %v1134, %v1132
      %1137 = vst [vmem:[#allocation2] sm:$0xff] %v1135
      %1138 = vst [vmem:[#allocation2 + $0x8] sm:$0xff] %v1136
      %1139 = vrot.lane.b32.xlu0 %v1102, 16
      %v1140 = vpop.permute.xlu0 %1139
      %1141 = vrot.lane.b32.xlu0 %v1104, 16
      %v1142 = vpop.permute.xlu0 %1141
      %1145 = vrot.lane.b32.xlu0 %v1101, 16
      %v1146 = vpop.permute.xlu0 %1145
      %1147 = vrot.lane.b32.xlu0 %v1103, 16
      %v1148 = vpop.permute.xlu0 %1147
      %v1149 = vsel %vm464, %v1146, %v1140
      %v1150 = vsel %vm464, %v1148, %v1142
      %v1155 = vsel %vm464, %v1140, %v1146
      %v1156 = vsel %vm464, %v1142, %v1148
      %v1157 = vld [vmem:[%s1 + $0x20] sm:$0xff]
      %v1158 = vld [vmem:[%s1 + $0x28] sm:$0xff]
      %v1159 = vld [vmem:[%s1 + $0x30] sm:$0xff]
      %v1160 = vld [vmem:[%s1 + $0x38] sm:$0xff]
      %v1161 = vmul.f32 %v1155, %v1157
      %v1162 = vmul.f32 %v1149, %v1158
      %v1163 = vmul.f32 %v1156, %v1159
      %v1164 = vmul.f32 %v1150, %v1160
      %v1165 = vpack.c.bf16 %v1163, %v1161
      %v1166 = vpack.c.bf16 %v1164, %v1162
      %1167 = vst [vmem:[#allocation2 + $0x10] sm:$0xff] %v1165
      %1168 = vst [vmem:[#allocation2 + $0x18] sm:$0xff] %v1166
      %1169 = vrot.lane.b32.xlu0 %v1102, 15
      %v1170 = vpop.permute.xlu0 %1169
      %1171 = vrot.lane.b32.xlu0 %v1104, 15
      %v1172 = vpop.permute.xlu0 %1171
      %1175 = vrot.lane.b32.xlu0 %v1101, 15
      %v1176 = vpop.permute.xlu0 %1175
      %1177 = vrot.lane.b32.xlu0 %v1103, 15
      %v1178 = vpop.permute.xlu0 %1177
      %v1179 = vsel %vm495, %v1176, %v1170
      %v1180 = vsel %vm495, %v1178, %v1172
      %v1185 = vsel %vm495, %v1170, %v1176
      %v1186 = vsel %vm495, %v1172, %v1178
      %v1187 = vld [vmem:[%s1 + $0x40] sm:$0xff]
      %v1188 = vld [vmem:[%s1 + $0x48] sm:$0xff]
      %v1189 = vld [vmem:[%s1 + $0x50] sm:$0xff]
      %v1190 = vld [vmem:[%s1 + $0x58] sm:$0xff]
      %v1191 = vmul.f32 %v1185, %v1187
      %v1192 = vmul.f32 %v1179, %v1188
      %v1193 = vmul.f32 %v1186, %v1189
      %v1194 = vmul.f32 %v1180, %v1190
      %v1195 = vpack.c.bf16 %v1193, %v1191
      %v1196 = vpack.c.bf16 %v1194, %v1192
      %1197 = vst [vmem:[#allocation2 + $0x20] sm:$0xff] %v1195
      %1198 = vst [vmem:[#allocation2 + $0x28] sm:$0xff] %v1196
      %1199 = vrot.lane.b32.xlu0 %v1102, 1
      %v1200 = vpop.permute.xlu0 %1199
      %1201 = vrot.lane.b32.xlu0 %v1104, 1
      %v1202 = vpop.permute.xlu0 %1201
      %1205 = vrot.lane.b32.xlu0 %v1101, 1
      %v1206 = vpop.permute.xlu0 %1205
      %1207 = vrot.lane.b32.xlu0 %v1103, 1
      %v1208 = vpop.permute.xlu0 %1207
      %v1209 = vsel %vm526, %v1206, %v1200
      %v1210 = vsel %vm526, %v1208, %v1202
      %v1215 = vsel %vm526, %v1200, %v1206
      %v1216 = vsel %vm526, %v1202, %v1208
      %v1217 = vld [vmem:[%s1 + $0x60] sm:$0xff]
      %v1218 = vld [vmem:[%s1 + $0x68] sm:$0xff]
      %v1219 = vld [vmem:[%s1 + $0x70] sm:$0xff]
      %v1220 = vld [vmem:[%s1 + $0x78] sm:$0xff]
      %v1221 = vmul.f32 %v1215, %v1217
      %v1222 = vmul.f32 %v1209, %v1218
      %v1223 = vmul.f32 %v1216, %v1219
      %v1224 = vmul.f32 %v1210, %v1220
      %v1225 = vpack.c.bf16 %v1223, %v1221
      %v1226 = vpack.c.bf16 %v1224, %v1222
      %1227 = vst [vmem:[#allocation2 + $0x30] sm:$0xff] %v1225
      %1228 = vst [vmem:[#allocation2 + $0x38] sm:$0xff] %v1226
      %v1229 = vpack.c.bf16 %v1103, %v1101
      %v1230 = vpack.c.bf16 %v1104, %v1102
      %1231 = vst [vmem:[#allocation2 + $0x40] sm:$0xff] %v1229
      %1232 = vst [vmem:[#allocation2 + $0x48] sm:$0xff] %v1230
      %1233 = vrot.lane.b32.xlu0 %v1101, 127
      %v1234 = vpop.permute.xlu0 %1233
      %1235 = vrot.lane.b32.xlu0 %v1102, 127
      %v1236 = vpop.permute.xlu0 %1235
      %1237 = vrot.lane.b32.xlu0 %v1103, 127
      %v1238 = vpop.permute.xlu0 %1237
      %1239 = vrot.lane.b32.xlu0 %v1104, 127
      %v1240 = vpop.permute.xlu0 %1239
      %v1241 = vsel %vm559, %v1234, %v1236
      %v1242 = vsel %vm559, %v1238, %v1240
      %v1249 = vsel %vm559, %v1236, %v1234
      %v1250 = vsel %vm559, %v1240, %v1238
      %v1251 = vld [vmem:[%s1 + $0xa0] sm:$0xff]
      %v1252 = vld [vmem:[%s1 + $0xa8] sm:$0xff]
      %v1253 = vld [vmem:[%s1 + $0xb0] sm:$0xff]
      %v1254 = vld [vmem:[%s1 + $0xb8] sm:$0xff]
      %v1255 = vmul.f32 %v1241, %v1251
      %v1256 = vmul.f32 %v1249, %v1252
      %v1257 = vmul.f32 %v1242, %v1253
      %v1258 = vmul.f32 %v1250, %v1254
      %v1259 = vpack.c.bf16 %v1257, %v1255
      %v1260 = vpack.c.bf16 %v1258, %v1256
      %1261 = vst [vmem:[#allocation2 + $0x50] sm:$0xff] %v1259
      %1262 = vst [vmem:[#allocation2 + $0x58] sm:$0xff] %v1260
      %1263 = vrot.lane.b32.xlu0 %v1101, 113
      %v1264 = vpop.permute.xlu0 %1263
      %1265 = vrot.lane.b32.xlu0 %v1102, 113
      %v1266 = vpop.permute.xlu0 %1265
      %1267 = vrot.lane.b32.xlu0 %v1103, 113
      %v1268 = vpop.permute.xlu0 %1267
      %1269 = vrot.lane.b32.xlu0 %v1104, 113
      %v1270 = vpop.permute.xlu0 %1269
      %v1271 = vsel %vm590, %v1264, %v1266
      %v1272 = vsel %vm590, %v1268, %v1270
      %v1279 = vsel %vm590, %v1266, %v1264
      %v1280 = vsel %vm590, %v1270, %v1268
      %v1281 = vld [vmem:[%s1 + $0xc0] sm:$0xff]
      %v1282 = vld [vmem:[%s1 + $0xc8] sm:$0xff]
      %v1283 = vld [vmem:[%s1 + $0xd0] sm:$0xff]
      %v1284 = vld [vmem:[%s1 + $0xd8] sm:$0xff]
      %v1285 = vmul.f32 %v1271, %v1281
      %v1286 = vmul.f32 %v1279, %v1282
      %v1287 = vmul.f32 %v1272, %v1283
      %v1288 = vmul.f32 %v1280, %v1284
      %v1289 = vpack.c.bf16 %v1287, %v1285
      %v1290 = vpack.c.bf16 %v1288, %v1286
      %1291 = vst [vmem:[#allocation2 + $0x60] sm:$0xff] %v1289
      %1292 = vst [vmem:[#allocation2 + $0x68] sm:$0xff] %v1290
      %1293 = vrot.lane.b32.xlu0 %v1101, 112
      %v1294 = vpop.permute.xlu0 %1293
      %1295 = vrot.lane.b32.xlu0 %v1102, 112
      %v1296 = vpop.permute.xlu0 %1295
      %1297 = vrot.lane.b32.xlu0 %v1103, 112
      %v1298 = vpop.permute.xlu0 %1297
      %1299 = vrot.lane.b32.xlu0 %v1104, 112
      %v1300 = vpop.permute.xlu0 %1299
      %v1301 = vsel %vm621, %v1294, %v1296
      %v1302 = vsel %vm621, %v1298, %v1300
      %v1309 = vsel %vm621, %v1296, %v1294
      %v1310 = vsel %vm621, %v1300, %v1298
      %v1311 = vld [vmem:[%s1 + $0xe0] sm:$0xff]
      %v1312 = vld [vmem:[%s1 + $0xe8] sm:$0xff]
      %v1313 = vld [vmem:[%s1 + $0xf0] sm:$0xff]
      %v1314 = vld [vmem:[%s1 + $0xf8] sm:$0xff]
      %v1315 = vmul.f32 %v1301, %v1311
      %v1316 = vmul.f32 %v1309, %v1312
      %v1317 = vmul.f32 %v1302, %v1313
      %v1318 = vmul.f32 %v1310, %v1314
      %v1319 = vpack.c.bf16 %v1317, %v1315
      %v1320 = vpack.c.bf16 %v1318, %v1316
      %1321 = vst [vmem:[#allocation2 + $0x70] sm:$0xff] %v1319
      %1322 = vst [vmem:[#allocation2 + $0x78] sm:$0xff] %v1320
      %1323 = vrot.lane.b32.xlu0 %v1101, 111
      %v1324 = vpop.permute.xlu0 %1323
      %1325 = vrot.lane.b32.xlu0 %v1102, 111
      %v1326 = vpop.permute.xlu0 %1325
      %1327 = vrot.lane.b32.xlu0 %v1103, 111
      %v1328 = vpop.permute.xlu0 %1327
      %1329 = vrot.lane.b32.xlu0 %v1104, 111
      %v1330 = vpop.permute.xlu0 %1329
      %v1331 = vsel %vm652, %v1324, %v1326
      %v1332 = vsel %vm652, %v1328, %v1330
      %v1339 = vsel %vm652, %v1326, %v1324
      %v1340 = vsel %vm652, %v1330, %v1328
      %v1341 = vld [vmem:[%s1 + $0x100] sm:$0xff]
      %v1342 = vld [vmem:[%s1 + $0x108] sm:$0xff]
      %v1343 = vld [vmem:[%s1 + $0x110] sm:$0xff]
      %v1344 = vld [vmem:[%s1 + $0x118] sm:$0xff]
      %v1345 = vmul.f32 %v1331, %v1341
      %v1346 = vmul.f32 %v1339, %v1342
      %v1347 = vmul.f32 %v1332, %v1343
      %v1348 = vmul.f32 %v1340, %v1344
      %v1349 = vpack.c.bf16 %v1347, %v1345
      %v1350 = vpack.c.bf16 %v1348, %v1346
      %1351 = vst [vmem:[#allocation2 + $0x80] sm:$0xff] %v1349
      %1352 = vst [vmem:[#allocation2 + $0x88] sm:$0xff] %v1350
      %v1353 = vld [vmem:[%s6] sm:$0xff]
      %v1354 = vld [vmem:[%s6 + $0x8] sm:$0xff]
      %v1355 = vld [vmem:[#allocation2] sm:$0xff]
      %v1356 = vld [vmem:[#allocation2 + $0x8] sm:$0xff]
      %v1357 = vld [vmem:[#allocation2 + $0x10] sm:$0xff]
      %v1358 = vld [vmem:[#allocation2 + $0x18] sm:$0xff]
      %v1359 = vld [vmem:[#allocation2 + $0x20] sm:$0xff]
      %v1360 = vld [vmem:[#allocation2 + $0x28] sm:$0xff]
      %v1361 = vld [vmem:[#allocation2 + $0x30] sm:$0xff]
      %v1362 = vld [vmem:[#allocation2 + $0x38] sm:$0xff]
      %v1363 = vld [vmem:[#allocation2 + $0x40] sm:$0xff]
      %v1364 = vld [vmem:[#allocation2 + $0x48] sm:$0xff]
      %v1365 = vld [vmem:[#allocation2 + $0x50] sm:$0xff]
      %v1366 = vld [vmem:[#allocation2 + $0x58] sm:$0xff]
      %v1367 = vld [vmem:[#allocation2 + $0x60] sm:$0xff]
      %v1368 = vld [vmem:[#allocation2 + $0x68] sm:$0xff]
      %v1369 = vld [vmem:[#allocation2 + $0x70] sm:$0xff]
      %v1370 = vld [vmem:[#allocation2 + $0x78] sm:$0xff]
      %v1371 = vld [vmem:[#allocation2 + $0x80] sm:$0xff]
      %v1372 = vld [vmem:[#allocation2 + $0x88] sm:$0xff]
      %v1373 = vld [vmem:[%s7] sm:$0xff]
      %v1374 = vld [vmem:[%s7 + $0x8] sm:$0xff]
      %1376 = vset.pattern.permute.xlu0 0
      %1377 = vperm.xlu0 %1376, %v1373
      %v1378 = vpop.permute.xlu0 %1377
      %1381 = vset.pattern.permute.xlu0 0
      %1382 = vperm.xlu0 %1381, %v1374
      %v1383 = vpop.permute.xlu0 %1382
      %v1387 = vunpack.c.l.b16 %v1353
      %v1388 = vunpack.c.h.b16 %v1353
      %v1389 = vunpack.c.l.b16 %v1354
      %v1390 = vunpack.c.h.b16 %v1354
      %v1391 = vpack.c.b16 %v1389, %v1387
      %v1392 = vpack.c.b16 %v1390, %v1388
      %v1395 = vsel %vm464, %v1392, 0
      %1397 = vmatprep.subr.bf16.mxu0 %v1356
      %1398 = vmatpush1.bf16.msra.mxu0 %v1355
      %1399 = vmatprep.subr.bf16.mxu0 %v1358
      %1400 = vmatpush1.bf16.msra.mxu0 %v1357
      %1401 = vmatprep.subr.bf16.mxu0 %v1360
      %1402 = vmatpush1.bf16.msra.mxu0 %v1359
      %1403 = vmatprep.subr.bf16.mxu0 %v1362
      %1404 = vmatpush1.bf16.msra.mxu0 %v1361
      %1405 = vmatprep.subr.bf16.mxu0 %v1364
      %1406 = vmatpush1.bf16.msra.mxu0 %v1363
      %1407 = vmatprep.subr.bf16.mxu0 %v1366
      %1408 = vmatpush1.bf16.msra.mxu0 %v1365
      %1409 = vmatprep.subr.bf16.mxu0 %v1368
      %1410 = vmatpush1.bf16.msra.mxu0 %v1367
      %1411 = vmatprep.subr.bf16.mxu0 %v1370
      %1412 = vmatpush1.bf16.msra.mxu0 %v1369
      %1413 = vmatprep.subr.bf16.mxu0 %v1372
      %1414 = vmatpush1.bf16.msra.mxu0 %v1371
      %1415 = vmatprep.subr.bf16.mxu0 0
      %1416 = vmatpush1.bf16.msra.mxu0 0
      %1417 = vmatprep.subr.bf16.mxu0 0
      %1418 = vmatpush1.bf16.msra.mxu0 0
      %1419 = vmatprep.subr.bf16.mxu0 0
      %1420 = vmatpush1.bf16.msra.mxu0 0
      %1421 = vmatprep.subr.bf16.mxu0 0
      %1422 = vmatpush1.bf16.msra.mxu0 0
      %1423 = vmatprep.subr.bf16.mxu0 0
      %1424 = vmatpush1.bf16.msra.mxu0 0
      %1425 = vmatprep.subr.bf16.mxu0 0
      %1426 = vmatpush1.bf16.msra.mxu0 0
      %1427 = vmatprep.subr.bf16.mxu0 0
      %1428 = vmatpush1.bf16.msra.mxu0 0
      %1429 = vmatprep.mubr.bf16.mxu0 %v1395
      %1430 = vmatmul.mubr.bf16.gmra.mrb[0].mxu0 %v1391
      %v1431 = vpop.f32.mrb[0].mxu0
      %v1432 = vadd.f32 %v1378, %v1431
      %v1433 = vpop.f32.mrb[0].mxu0
      %v1434 = vadd.f32 %v1378, %v1433
      %v1435 = vpop.f32.mrb[0].mxu0
      %v1436 = vadd.f32 %v1383, %v1435
      %v1437 = vpop.f32.mrb[0].mxu0
      %v1438 = vadd.f32 %v1383, %v1437
      %1439 = vdwg.mxu0
      %v1440 = vmax.f32 %v1432, 0.0
      %v1441 = vmax.f32 %v1434, 0.0
      %v1442 = vmax.f32 %v1436, 0.0
      %v1443 = vmax.f32 %v1438, 0.0
      %1446 = vrot.lane.b32.xlu0 %v1441, 17
      %v1447 = vpop.permute.xlu0 %1446
      %1448 = vrot.lane.b32.xlu0 %v1443, 17
      %v1449 = vpop.permute.xlu0 %1448
      %1454 = vrot.lane.b32.xlu0 %v1440, 17
      %v1455 = vpop.permute.xlu0 %1454
      %1456 = vrot.lane.b32.xlu0 %v1442, 17
      %v1457 = vpop.permute.xlu0 %1456
      %v1458 = vsel %vm433, %v1455, %v1447
      %v1459 = vsel %vm433, %v1457, %v1449
      %v1464 = vsel %vm433, %v1447, %v1455
      %v1465 = vsel %vm433, %v1449, %v1457
      %v1466 = vld [vmem:[%s1] sm:$0xff]
      %v1467 = vld [vmem:[%s1 + $0x8] sm:$0xff]
      %v1468 = vld [vmem:[%s1 + $0x10] sm:$0xff]
      %v1469 = vld [vmem:[%s1 + $0x18] sm:$0xff]
      %v1470 = vmul.f32 %v1464, %v1466
      %v1471 = vmul.f32 %v1458, %v1467
      %v1472 = vmul.f32 %v1465, %v1468
      %v1473 = vmul.f32 %v1459, %v1469
      %v1474 = vpack.c.bf16 %v1472, %v1470
      %v1475 = vpack.c.bf16 %v1473, %v1471
      %1476 = vst [vmem:[#allocation2] sm:$0xff] %v1474
      %1477 = vst [vmem:[#allocation2 + $0x8] sm:$0xff] %v1475
      %1478 = vrot.lane.b32.xlu0 %v1441, 16
      %v1479 = vpop.permute.xlu0 %1478
      %1480 = vrot.lane.b32.xlu0 %v1443, 16
      %v1481 = vpop.permute.xlu0 %1480
      %1484 = vrot.lane.b32.xlu0 %v1440, 16
      %v1485 = vpop.permute.xlu0 %1484
      %1486 = vrot.lane.b32.xlu0 %v1442, 16
      %v1487 = vpop.permute.xlu0 %1486
      %v1488 = vsel %vm464, %v1485, %v1479
      %v1489 = vsel %vm464, %v1487, %v1481
      %v1494 = vsel %vm464, %v1479, %v1485
      %v1495 = vsel %vm464, %v1481, %v1487
      %v1496 = vld [vmem:[%s1 + $0x20] sm:$0xff]
      %v1497 = vld [vmem:[%s1 + $0x28] sm:$0xff]
      %v1498 = vld [vmem:[%s1 + $0x30] sm:$0xff]
      %v1499 = vld [vmem:[%s1 + $0x38] sm:$0xff]
      %v1500 = vmul.f32 %v1494, %v1496
      %v1501 = vmul.f32 %v1488, %v1497
      %v1502 = vmul.f32 %v1495, %v1498
      %v1503 = vmul.f32 %v1489, %v1499
      %v1504 = vpack.c.bf16 %v1502, %v1500
      %v1505 = vpack.c.bf16 %v1503, %v1501
      %1506 = vst [vmem:[#allocation2 + $0x10] sm:$0xff] %v1504
      %1507 = vst [vmem:[#allocation2 + $0x18] sm:$0xff] %v1505
      %1508 = vrot.lane.b32.xlu0 %v1441, 15
      %v1509 = vpop.permute.xlu0 %1508
      %1510 = vrot.lane.b32.xlu0 %v1443, 15
      %v1511 = vpop.permute.xlu0 %1510
      %1514 = vrot.lane.b32.xlu0 %v1440, 15
      %v1515 = vpop.permute.xlu0 %1514
      %1516 = vrot.lane.b32.xlu0 %v1442, 15
      %v1517 = vpop.permute.xlu0 %1516
      %v1518 = vsel %vm495, %v1515, %v1509
      %v1519 = vsel %vm495, %v1517, %v1511
      %v1524 = vsel %vm495, %v1509, %v1515
      %v1525 = vsel %vm495, %v1511, %v1517
      %v1526 = vld [vmem:[%s1 + $0x40] sm:$0xff]
      %v1527 = vld [vmem:[%s1 + $0x48] sm:$0xff]
      %v1528 = vld [vmem:[%s1 + $0x50] sm:$0xff]
      %v1529 = vld [vmem:[%s1 + $0x58] sm:$0xff]
      %v1530 = vmul.f32 %v1524, %v1526
      %v1531 = vmul.f32 %v1518, %v1527
      %v1532 = vmul.f32 %v1525, %v1528
      %v1533 = vmul.f32 %v1519, %v1529
      %v1534 = vpack.c.bf16 %v1532, %v1530
      %v1535 = vpack.c.bf16 %v1533, %v1531
      %1536 = vst [vmem:[#allocation2 + $0x20] sm:$0xff] %v1534
      %1537 = vst [vmem:[#allocation2 + $0x28] sm:$0xff] %v1535
      %1538 = vrot.lane.b32.xlu0 %v1441, 1
      %v1539 = vpop.permute.xlu0 %1538
      %1540 = vrot.lane.b32.xlu0 %v1443, 1
      %v1541 = vpop.permute.xlu0 %1540
      %1544 = vrot.lane.b32.xlu0 %v1440, 1
      %v1545 = vpop.permute.xlu0 %1544
      %1546 = vrot.lane.b32.xlu0 %v1442, 1
      %v1547 = vpop.permute.xlu0 %1546
      %v1548 = vsel %vm526, %v1545, %v1539
      %v1549 = vsel %vm526, %v1547, %v1541
      %v1554 = vsel %vm526, %v1539, %v1545
      %v1555 = vsel %vm526, %v1541, %v1547
      %v1556 = vld [vmem:[%s1 + $0x60] sm:$0xff]
      %v1557 = vld [vmem:[%s1 + $0x68] sm:$0xff]
      %v1558 = vld [vmem:[%s1 + $0x70] sm:$0xff]
      %v1559 = vld [vmem:[%s1 + $0x78] sm:$0xff]
      %v1560 = vmul.f32 %v1554, %v1556
      %v1561 = vmul.f32 %v1548, %v1557
      %v1562 = vmul.f32 %v1555, %v1558
      %v1563 = vmul.f32 %v1549, %v1559
      %v1564 = vpack.c.bf16 %v1562, %v1560
      %v1565 = vpack.c.bf16 %v1563, %v1561
      %1566 = vst [vmem:[#allocation2 + $0x30] sm:$0xff] %v1564
      %1567 = vst [vmem:[#allocation2 + $0x38] sm:$0xff] %v1565
      %v1568 = vpack.c.bf16 %v1442, %v1440
      %v1569 = vpack.c.bf16 %v1443, %v1441
      %1570 = vst [vmem:[#allocation2 + $0x40] sm:$0xff] %v1568
      %1571 = vst [vmem:[#allocation2 + $0x48] sm:$0xff] %v1569
      %1572 = vrot.lane.b32.xlu0 %v1440, 127
      %v1573 = vpop.permute.xlu0 %1572
      %1574 = vrot.lane.b32.xlu0 %v1441, 127
      %v1575 = vpop.permute.xlu0 %1574
      %1576 = vrot.lane.b32.xlu0 %v1442, 127
      %v1577 = vpop.permute.xlu0 %1576
      %1578 = vrot.lane.b32.xlu0 %v1443, 127
      %v1579 = vpop.permute.xlu0 %1578
      %v1580 = vsel %vm559, %v1573, %v1575
      %v1581 = vsel %vm559, %v1577, %v1579
      %v1588 = vsel %vm559, %v1575, %v1573
      %v1589 = vsel %vm559, %v1579, %v1577
      %v1590 = vld [vmem:[%s1 + $0xa0] sm:$0xff]
      %v1591 = vld [vmem:[%s1 + $0xa8] sm:$0xff]
      %v1592 = vld [vmem:[%s1 + $0xb0] sm:$0xff]
      %v1593 = vld [vmem:[%s1 + $0xb8] sm:$0xff]
      %v1594 = vmul.f32 %v1580, %v1590
      %v1595 = vmul.f32 %v1588, %v1591
      %v1596 = vmul.f32 %v1581, %v1592
      %v1597 = vmul.f32 %v1589, %v1593
      %v1598 = vpack.c.bf16 %v1596, %v1594
      %v1599 = vpack.c.bf16 %v1597, %v1595
      %1600 = vst [vmem:[#allocation2 + $0x50] sm:$0xff] %v1598
      %1601 = vst [vmem:[#allocation2 + $0x58] sm:$0xff] %v1599
      %1602 = vrot.lane.b32.xlu0 %v1440, 113
      %v1603 = vpop.permute.xlu0 %1602
      %1604 = vrot.lane.b32.xlu0 %v1441, 113
      %v1605 = vpop.permute.xlu0 %1604
      %1606 = vrot.lane.b32.xlu0 %v1442, 113
      %v1607 = vpop.permute.xlu0 %1606
      %1608 = vrot.lane.b32.xlu0 %v1443, 113
      %v1609 = vpop.permute.xlu0 %1608
      %v1610 = vsel %vm590, %v1603, %v1605
      %v1611 = vsel %vm590, %v1607, %v1609
      %v1618 = vsel %vm590, %v1605, %v1603
      %v1619 = vsel %vm590, %v1609, %v1607
      %v1620 = vld [vmem:[%s1 + $0xc0] sm:$0xff]
      %v1621 = vld [vmem:[%s1 + $0xc8] sm:$0xff]
      %v1622 = vld [vmem:[%s1 + $0xd0] sm:$0xff]
      %v1623 = vld [vmem:[%s1 + $0xd8] sm:$0xff]
      %v1624 = vmul.f32 %v1610, %v1620
      %v1625 = vmul.f32 %v1618, %v1621
      %v1626 = vmul.f32 %v1611, %v1622
      %v1627 = vmul.f32 %v1619, %v1623
      %v1628 = vpack.c.bf16 %v1626, %v1624
      %v1629 = vpack.c.bf16 %v1627, %v1625
      %1630 = vst [vmem:[#allocation2 + $0x60] sm:$0xff] %v1628
      %1631 = vst [vmem:[#allocation2 + $0x68] sm:$0xff] %v1629
      %1632 = vrot.lane.b32.xlu0 %v1440, 112
      %v1633 = vpop.permute.xlu0 %1632
      %1634 = vrot.lane.b32.xlu0 %v1441, 112
      %v1635 = vpop.permute.xlu0 %1634
      %1636 = vrot.lane.b32.xlu0 %v1442, 112
      %v1637 = vpop.permute.xlu0 %1636
      %1638 = vrot.lane.b32.xlu0 %v1443, 112
      %v1639 = vpop.permute.xlu0 %1638
      %v1640 = vsel %vm621, %v1633, %v1635
      %v1641 = vsel %vm621, %v1637, %v1639
      %v1648 = vsel %vm621, %v1635, %v1633
      %v1649 = vsel %vm621, %v1639, %v1637
      %v1650 = vld [vmem:[%s1 + $0xe0] sm:$0xff]
      %v1651 = vld [vmem:[%s1 + $0xe8] sm:$0xff]
      %v1652 = vld [vmem:[%s1 + $0xf0] sm:$0xff]
      %v1653 = vld [vmem:[%s1 + $0xf8] sm:$0xff]
      %v1654 = vmul.f32 %v1640, %v1650
      %v1655 = vmul.f32 %v1648, %v1651
      %v1656 = vmul.f32 %v1641, %v1652
      %v1657 = vmul.f32 %v1649, %v1653
      %v1658 = vpack.c.bf16 %v1656, %v1654
      %v1659 = vpack.c.bf16 %v1657, %v1655
      %1660 = vst [vmem:[#allocation2 + $0x70] sm:$0xff] %v1658
      %1661 = vst [vmem:[#allocation2 + $0x78] sm:$0xff] %v1659
      %1662 = vrot.lane.b32.xlu0 %v1440, 111
      %v1663 = vpop.permute.xlu0 %1662
      %1664 = vrot.lane.b32.xlu0 %v1441, 111
      %v1665 = vpop.permute.xlu0 %1664
      %1666 = vrot.lane.b32.xlu0 %v1442, 111
      %v1667 = vpop.permute.xlu0 %1666
      %1668 = vrot.lane.b32.xlu0 %v1443, 111
      %v1669 = vpop.permute.xlu0 %1668
      %v1670 = vsel %vm652, %v1663, %v1665
      %v1671 = vsel %vm652, %v1667, %v1669
      %v1678 = vsel %vm652, %v1665, %v1663
      %v1679 = vsel %vm652, %v1669, %v1667
      %v1680 = vld [vmem:[%s1 + $0x100] sm:$0xff]
      %v1681 = vld [vmem:[%s1 + $0x108] sm:$0xff]
      %v1682 = vld [vmem:[%s1 + $0x110] sm:$0xff]
      %v1683 = vld [vmem:[%s1 + $0x118] sm:$0xff]
      %v1684 = vmul.f32 %v1670, %v1680
      %v1685 = vmul.f32 %v1678, %v1681
      %v1686 = vmul.f32 %v1671, %v1682
      %v1687 = vmul.f32 %v1679, %v1683
      %v1688 = vpack.c.bf16 %v1686, %v1684
      %v1689 = vpack.c.bf16 %v1687, %v1685
      %1690 = vst [vmem:[#allocation2 + $0x80] sm:$0xff] %v1688
      %1691 = vst [vmem:[#allocation2 + $0x88] sm:$0xff] %v1689
      %v1692 = vld [vmem:[%s8] sm:$0xff]
      %v1693 = vld [vmem:[%s8 + $0x8] sm:$0xff]
      %v1694 = vld [vmem:[#allocation2] sm:$0xff]
      %v1695 = vld [vmem:[#allocation2 + $0x8] sm:$0xff]
      %v1696 = vld [vmem:[#allocation2 + $0x10] sm:$0xff]
      %v1697 = vld [vmem:[#allocation2 + $0x18] sm:$0xff]
      %v1698 = vld [vmem:[#allocation2 + $0x20] sm:$0xff]
      %v1699 = vld [vmem:[#allocation2 + $0x28] sm:$0xff]
      %v1700 = vld [vmem:[#allocation2 + $0x30] sm:$0xff]
      %v1701 = vld [vmem:[#allocation2 + $0x38] sm:$0xff]
      %v1702 = vld [vmem:[#allocation2 + $0x40] sm:$0xff]
      %v1703 = vld [vmem:[#allocation2 + $0x48] sm:$0xff]
      %v1704 = vld [vmem:[#allocation2 + $0x50] sm:$0xff]
      %v1705 = vld [vmem:[#allocation2 + $0x58] sm:$0xff]
      %v1706 = vld [vmem:[#allocation2 + $0x60] sm:$0xff]
      %v1707 = vld [vmem:[#allocation2 + $0x68] sm:$0xff]
      %v1708 = vld [vmem:[#allocation2 + $0x70] sm:$0xff]
      %v1709 = vld [vmem:[#allocation2 + $0x78] sm:$0xff]
      %v1710 = vld [vmem:[#allocation2 + $0x80] sm:$0xff]
      %v1711 = vld [vmem:[#allocation2 + $0x88] sm:$0xff]
      %v1712 = vld [vmem:[%s9] sm:$0xff]
      %v1713 = vld [vmem:[%s9 + $0x8] sm:$0xff]
      %1715 = vset.pattern.permute.xlu0 0
      %1716 = vperm.xlu0 %1715, %v1712
      %v1717 = vpop.permute.xlu0 %1716
      %1720 = vset.pattern.permute.xlu0 0
      %1721 = vperm.xlu0 %1720, %v1713
      %v1722 = vpop.permute.xlu0 %1721
      %v1726 = vunpack.c.l.b16 %v1692
      %v1727 = vunpack.c.h.b16 %v1692
      %v1728 = vunpack.c.l.b16 %v1693
      %v1729 = vunpack.c.h.b16 %v1693
      %v1730 = vpack.c.b16 %v1728, %v1726
      %v1731 = vpack.c.b16 %v1729, %v1727
      %v1734 = vsel %vm464, %v1731, 0
      %1736 = vmatprep.subr.bf16.mxu0 %v1695
      %1737 = vmatpush1.bf16.msra.mxu0 %v1694
      %1738 = vmatprep.subr.bf16.mxu0 %v1697
      %1739 = vmatpush1.bf16.msra.mxu0 %v1696
      %1740 = vmatprep.subr.bf16.mxu0 %v1699
      %1741 = vmatpush1.bf16.msra.mxu0 %v1698
      %1742 = vmatprep.subr.bf16.mxu0 %v1701
      %1743 = vmatpush1.bf16.msra.mxu0 %v1700
      %1744 = vmatprep.subr.bf16.mxu0 %v1703
      %1745 = vmatpush1.bf16.msra.mxu0 %v1702
      %1746 = vmatprep.subr.bf16.mxu0 %v1705
      %1747 = vmatpush1.bf16.msra.mxu0 %v1704
      %1748 = vmatprep.subr.bf16.mxu0 %v1707
      %1749 = vmatpush1.bf16.msra.mxu0 %v1706
      %1750 = vmatprep.subr.bf16.mxu0 %v1709
      %1751 = vmatpush1.bf16.msra.mxu0 %v1708
      %1752 = vmatprep.subr.bf16.mxu0 %v1711
      %1753 = vmatpush1.bf16.msra.mxu0 %v1710
      %1754 = vmatprep.subr.bf16.mxu0 0
      %1755 = vmatpush1.bf16.msra.mxu0 0
      %1756 = vmatprep.subr.bf16.mxu0 0
      %1757 = vmatpush1.bf16.msra.mxu0 0
      %1758 = vmatprep.subr.bf16.mxu0 0
      %1759 = vmatpush1.bf16.msra.mxu0 0
      %1760 = vmatprep.subr.bf16.mxu0 0
      %1761 = vmatpush1.bf16.msra.mxu0 0
      %1762 = vmatprep.subr.bf16.mxu0 0
      %1763 = vmatpush1.bf16.msra.mxu0 0
      %1764 = vmatprep.subr.bf16.mxu0 0
      %1765 = vmatpush1.bf16.msra.mxu0 0
      %1766 = vmatprep.subr.bf16.mxu0 0
      %1767 = vmatpush1.bf16.msra.mxu0 0
      %1768 = vmatprep.mubr.bf16.mxu0 %v1734
      %1769 = vmatmul.mubr.bf16.gmra.mrb[0].mxu0 %v1730
      %v1770 = vpop.f32.mrb[0].mxu0
      %v1771 = vadd.f32 %v1717, %v1770
      %v1772 = vpop.f32.mrb[0].mxu0
      %v1773 = vadd.f32 %v1717, %v1772
      %v1774 = vpop.f32.mrb[0].mxu0
      %v1775 = vadd.f32 %v1722, %v1774
      %v1776 = vpop.f32.mrb[0].mxu0
      %v1777 = vadd.f32 %v1722, %v1776
      %1778 = vdwg.mxu0
      %v1779 = vmax.f32 %v1771, 0.0
      %v1780 = vmax.f32 %v1773, 0.0
      %v1781 = vmax.f32 %v1775, 0.0
      %v1782 = vmax.f32 %v1777, 0.0
      %1785 = vrot.lane.b32.xlu0 %v1780, 17
      %v1786 = vpop.permute.xlu0 %1785
      %1787 = vrot.lane.b32.xlu0 %v1782, 17
      %v1788 = vpop.permute.xlu0 %1787
      %1793 = vrot.lane.b32.xlu0 %v1779, 17
      %v1794 = vpop.permute.xlu0 %1793
      %1795 = vrot.lane.b32.xlu0 %v1781, 17
      %v1796 = vpop.permute.xlu0 %1795
      %v1797 = vsel %vm433, %v1794, %v1786
      %v1798 = vsel %vm433, %v1796, %v1788
      %v1803 = vsel %vm433, %v1786, %v1794
      %v1804 = vsel %vm433, %v1788, %v1796
      %v1805 = vld [vmem:[%s1] sm:$0xff]
      %v1806 = vld [vmem:[%s1 + $0x8] sm:$0xff]
      %v1807 = vld [vmem:[%s1 + $0x10] sm:$0xff]
      %v1808 = vld [vmem:[%s1 + $0x18] sm:$0xff]
      %v1809 = vmul.f32 %v1803, %v1805
      %v1810 = vmul.f32 %v1797, %v1806
      %v1811 = vmul.f32 %v1804, %v1807
      %v1812 = vmul.f32 %v1798, %v1808
      %v1813 = vpack.c.bf16 %v1811, %v1809
      %v1814 = vpack.c.bf16 %v1812, %v1810
      %1815 = vst [vmem:[#allocation2] sm:$0xff] %v1813
      %1816 = vst [vmem:[#allocation2 + $0x8] sm:$0xff] %v1814
      %1817 = vrot.lane.b32.xlu0 %v1780, 16
      %v1818 = vpop.permute.xlu0 %1817
      %1819 = vrot.lane.b32.xlu0 %v1782, 16
      %v1820 = vpop.permute.xlu0 %1819
      %1823 = vrot.lane.b32.xlu0 %v1779, 16
      %v1824 = vpop.permute.xlu0 %1823
      %1825 = vrot.lane.b32.xlu0 %v1781, 16
      %v1826 = vpop.permute.xlu0 %1825
      %v1827 = vsel %vm464, %v1824, %v1818
      %v1828 = vsel %vm464, %v1826, %v1820
      %v1833 = vsel %vm464, %v1818, %v1824
      %v1834 = vsel %vm464, %v1820, %v1826
      %v1835 = vld [vmem:[%s1 + $0x20] sm:$0xff]
      %v1836 = vld [vmem:[%s1 + $0x28] sm:$0xff]
      %v1837 = vld [vmem:[%s1 + $0x30] sm:$0xff]
      %v1838 = vld [vmem:[%s1 + $0x38] sm:$0xff]
      %v1839 = vmul.f32 %v1833, %v1835
      %v1840 = vmul.f32 %v1827, %v1836
      %v1841 = vmul.f32 %v1834, %v1837
      %v1842 = vmul.f32 %v1828, %v1838
      %v1843 = vpack.c.bf16 %v1841, %v1839
      %v1844 = vpack.c.bf16 %v1842, %v1840
      %1845 = vst [vmem:[#allocation2 + $0x10] sm:$0xff] %v1843
      %1846 = vst [vmem:[#allocation2 + $0x18] sm:$0xff] %v1844
      %1847 = vrot.lane.b32.xlu0 %v1780, 15
      %v1848 = vpop.permute.xlu0 %1847
      %1849 = vrot.lane.b32.xlu0 %v1782, 15
      %v1850 = vpop.permute.xlu0 %1849
      %1853 = vrot.lane.b32.xlu0 %v1779, 15
      %v1854 = vpop.permute.xlu0 %1853
      %1855 = vrot.lane.b32.xlu0 %v1781, 15
      %v1856 = vpop.permute.xlu0 %1855
      %v1857 = vsel %vm495, %v1854, %v1848
      %v1858 = vsel %vm495, %v1856, %v1850
      %v1863 = vsel %vm495, %v1848, %v1854
      %v1864 = vsel %vm495, %v1850, %v1856
      %v1865 = vld [vmem:[%s1 + $0x40] sm:$0xff]
      %v1866 = vld [vmem:[%s1 + $0x48] sm:$0xff]
      %v1867 = vld [vmem:[%s1 + $0x50] sm:$0xff]
      %v1868 = vld [vmem:[%s1 + $0x58] sm:$0xff]
      %v1869 = vmul.f32 %v1863, %v1865
      %v1870 = vmul.f32 %v1857, %v1866
      %v1871 = vmul.f32 %v1864, %v1867
      %v1872 = vmul.f32 %v1858, %v1868
      %v1873 = vpack.c.bf16 %v1871, %v1869
      %v1874 = vpack.c.bf16 %v1872, %v1870
      %1875 = vst [vmem:[#allocation2 + $0x20] sm:$0xff] %v1873
      %1876 = vst [vmem:[#allocation2 + $0x28] sm:$0xff] %v1874
      %1877 = vrot.lane.b32.xlu0 %v1780, 1
      %v1878 = vpop.permute.xlu0 %1877
      %1879 = vrot.lane.b32.xlu0 %v1782, 1
      %v1880 = vpop.permute.xlu0 %1879
      %1883 = vrot.lane.b32.xlu0 %v1779, 1
      %v1884 = vpop.permute.xlu0 %1883
      %1885 = vrot.lane.b32.xlu0 %v1781, 1
      %v1886 = vpop.permute.xlu0 %1885
      %v1887 = vsel %vm526, %v1884, %v1878
      %v1888 = vsel %vm526, %v1886, %v1880
      %v1893 = vsel %vm526, %v1878, %v1884
      %v1894 = vsel %vm526, %v1880, %v1886
      %v1895 = vld [vmem:[%s1 + $0x60] sm:$0xff]
      %v1896 = vld [vmem:[%s1 + $0x68] sm:$0xff]
      %v1897 = vld [vmem:[%s1 + $0x70] sm:$0xff]
      %v1898 = vld [vmem:[%s1 + $0x78] sm:$0xff]
      %v1899 = vmul.f32 %v1893, %v1895
      %v1900 = vmul.f32 %v1887, %v1896
      %v1901 = vmul.f32 %v1894, %v1897
      %v1902 = vmul.f32 %v1888, %v1898
      %v1903 = vpack.c.bf16 %v1901, %v1899
      %v1904 = vpack.c.bf16 %v1902, %v1900
      %1905 = vst [vmem:[#allocation2 + $0x30] sm:$0xff] %v1903
      %1906 = vst [vmem:[#allocation2 + $0x38] sm:$0xff] %v1904
      %v1907 = vpack.c.bf16 %v1781, %v1779
      %v1908 = vpack.c.bf16 %v1782, %v1780
      %1909 = vst [vmem:[#allocation2 + $0x40] sm:$0xff] %v1907
      %1910 = vst [vmem:[#allocation2 + $0x48] sm:$0xff] %v1908
      %1911 = vrot.lane.b32.xlu0 %v1779, 127
      %v1912 = vpop.permute.xlu0 %1911
      %1913 = vrot.lane.b32.xlu0 %v1780, 127
      %v1914 = vpop.permute.xlu0 %1913
      %1915 = vrot.lane.b32.xlu0 %v1781, 127
      %v1916 = vpop.permute.xlu0 %1915
      %1917 = vrot.lane.b32.xlu0 %v1782, 127
      %v1918 = vpop.permute.xlu0 %1917
      %v1919 = vsel %vm559, %v1912, %v1914
      %v1920 = vsel %vm559, %v1916, %v1918
      %v1927 = vsel %vm559, %v1914, %v1912
      %v1928 = vsel %vm559, %v1918, %v1916
      %v1929 = vld [vmem:[%s1 + $0xa0] sm:$0xff]
      %v1930 = vld [vmem:[%s1 + $0xa8] sm:$0xff]
      %v1931 = vld [vmem:[%s1 + $0xb0] sm:$0xff]
      %v1932 = vld [vmem:[%s1 + $0xb8] sm:$0xff]
      %v1933 = vmul.f32 %v1919, %v1929
      %v1934 = vmul.f32 %v1927, %v1930
      %v1935 = vmul.f32 %v1920, %v1931
      %v1936 = vmul.f32 %v1928, %v1932
      %v1937 = vpack.c.bf16 %v1935, %v1933
      %v1938 = vpack.c.bf16 %v1936, %v1934
      %1939 = vst [vmem:[#allocation2 + $0x50] sm:$0xff] %v1937
      %1940 = vst [vmem:[#allocation2 + $0x58] sm:$0xff] %v1938
      %1941 = vrot.lane.b32.xlu0 %v1779, 113
      %v1942 = vpop.permute.xlu0 %1941
      %1943 = vrot.lane.b32.xlu0 %v1780, 113
      %v1944 = vpop.permute.xlu0 %1943
      %1945 = vrot.lane.b32.xlu0 %v1781, 113
      %v1946 = vpop.permute.xlu0 %1945
      %1947 = vrot.lane.b32.xlu0 %v1782, 113
      %v1948 = vpop.permute.xlu0 %1947
      %v1949 = vsel %vm590, %v1942, %v1944
      %v1950 = vsel %vm590, %v1946, %v1948
      %v1957 = vsel %vm590, %v1944, %v1942
      %v1958 = vsel %vm590, %v1948, %v1946
      %v1959 = vld [vmem:[%s1 + $0xc0] sm:$0xff]
      %v1960 = vld [vmem:[%s1 + $0xc8] sm:$0xff]
      %v1961 = vld [vmem:[%s1 + $0xd0] sm:$0xff]
      %v1962 = vld [vmem:[%s1 + $0xd8] sm:$0xff]
      %v1963 = vmul.f32 %v1949, %v1959
      %v1964 = vmul.f32 %v1957, %v1960
      %v1965 = vmul.f32 %v1950, %v1961
      %v1966 = vmul.f32 %v1958, %v1962
      %v1967 = vpack.c.bf16 %v1965, %v1963
      %v1968 = vpack.c.bf16 %v1966, %v1964
      %1969 = vst [vmem:[#allocation2 + $0x60] sm:$0xff] %v1967
      %1970 = vst [vmem:[#allocation2 + $0x68] sm:$0xff] %v1968
      %1971 = vrot.lane.b32.xlu0 %v1779, 112
      %v1972 = vpop.permute.xlu0 %1971
      %1973 = vrot.lane.b32.xlu0 %v1780, 112
      %v1974 = vpop.permute.xlu0 %1973
      %1975 = vrot.lane.b32.xlu0 %v1781, 112
      %v1976 = vpop.permute.xlu0 %1975
      %1977 = vrot.lane.b32.xlu0 %v1782, 112
      %v1978 = vpop.permute.xlu0 %1977
      %v1979 = vsel %vm621, %v1972, %v1974
      %v1980 = vsel %vm621, %v1976, %v1978
      %v1987 = vsel %vm621, %v1974, %v1972
      %v1988 = vsel %vm621, %v1978, %v1976
      %v1989 = vld [vmem:[%s1 + $0xe0] sm:$0xff]
      %v1990 = vld [vmem:[%s1 + $0xe8] sm:$0xff]
      %v1991 = vld [vmem:[%s1 + $0xf0] sm:$0xff]
      %v1992 = vld [vmem:[%s1 + $0xf8] sm:$0xff]
      %v1993 = vmul.f32 %v1979, %v1989
      %v1994 = vmul.f32 %v1987, %v1990
      %v1995 = vmul.f32 %v1980, %v1991
      %v1996 = vmul.f32 %v1988, %v1992
      %v1997 = vpack.c.bf16 %v1995, %v1993
      %v1998 = vpack.c.bf16 %v1996, %v1994
      %1999 = vst [vmem:[#allocation2 + $0x70] sm:$0xff] %v1997
      %2000 = vst [vmem:[#allocation2 + $0x78] sm:$0xff] %v1998
      %2001 = vrot.lane.b32.xlu0 %v1779, 111
      %v2002 = vpop.permute.xlu0 %2001
      %2003 = vrot.lane.b32.xlu0 %v1780, 111
      %v2004 = vpop.permute.xlu0 %2003
      %2005 = vrot.lane.b32.xlu0 %v1781, 111
      %v2006 = vpop.permute.xlu0 %2005
      %2007 = vrot.lane.b32.xlu0 %v1782, 111
      %v2008 = vpop.permute.xlu0 %2007
      %v2009 = vsel %vm652, %v2002, %v2004
      %v2010 = vsel %vm652, %v2006, %v2008
      %v2017 = vsel %vm652, %v2004, %v2002
      %v2018 = vsel %vm652, %v2008, %v2006
      %v2019 = vld [vmem:[%s1 + $0x100] sm:$0xff]
      %v2020 = vld [vmem:[%s1 + $0x108] sm:$0xff]
      %v2021 = vld [vmem:[%s1 + $0x110] sm:$0xff]
      %v2022 = vld [vmem:[%s1 + $0x118] sm:$0xff]
      %v2023 = vmul.f32 %v2009, %v2019
      %v2024 = vmul.f32 %v2017, %v2020
      %v2025 = vmul.f32 %v2010, %v2021
      %v2026 = vmul.f32 %v2018, %v2022
      %v2027 = vpack.c.bf16 %v2025, %v2023
      %v2028 = vpack.c.bf16 %v2026, %v2024
      %2029 = vst [vmem:[#allocation2 + $0x80] sm:$0xff] %v2027
      %2030 = vst [vmem:[#allocation2 + $0x88] sm:$0xff] %v2028
      %v2031 = vld [vmem:[%s10] sm:$0xff]
      %v2032 = vld [vmem:[%s10 + $0x8] sm:$0xff]
      %v2033 = vld [vmem:[#allocation2] sm:$0xff]
      %v2034 = vld [vmem:[#allocation2 + $0x8] sm:$0xff]
      %v2035 = vld [vmem:[#allocation2 + $0x10] sm:$0xff]
      %v2036 = vld [vmem:[#allocation2 + $0x18] sm:$0xff]
      %v2037 = vld [vmem:[#allocation2 + $0x20] sm:$0xff]
      %v2038 = vld [vmem:[#allocation2 + $0x28] sm:$0xff]
      %v2039 = vld [vmem:[#allocation2 + $0x30] sm:$0xff]
      %v2040 = vld [vmem:[#allocation2 + $0x38] sm:$0xff]
      %v2041 = vld [vmem:[#allocation2 + $0x40] sm:$0xff]
      %v2042 = vld [vmem:[#allocation2 + $0x48] sm:$0xff]
      %v2043 = vld [vmem:[#allocation2 + $0x50] sm:$0xff]
      %v2044 = vld [vmem:[#allocation2 + $0x58] sm:$0xff]
      %v2045 = vld [vmem:[#allocation2 + $0x60] sm:$0xff]
      %v2046 = vld [vmem:[#allocation2 + $0x68] sm:$0xff]
      %v2047 = vld [vmem:[#allocation2 + $0x70] sm:$0xff]
      %v2048 = vld [vmem:[#allocation2 + $0x78] sm:$0xff]
      %v2049 = vld [vmem:[#allocation2 + $0x80] sm:$0xff]
      %v2050 = vld [vmem:[#allocation2 + $0x88] sm:$0xff]
      %v2051 = vld [vmem:[%s11] sm:$0xff]
      %v2052 = vld [vmem:[%s11 + $0x8] sm:$0xff]
      %2054 = vset.pattern.permute.xlu0 0
      %2055 = vperm.xlu0 %2054, %v2051
      %v2056 = vpop.permute.xlu0 %2055
      %2059 = vset.pattern.permute.xlu0 0
      %2060 = vperm.xlu0 %2059, %v2052
      %v2061 = vpop.permute.xlu0 %2060
      %v2065 = vunpack.c.l.b16 %v2031
      %v2066 = vunpack.c.h.b16 %v2031
      %v2067 = vunpack.c.l.b16 %v2032
      %v2068 = vunpack.c.h.b16 %v2032
      %v2069 = vpack.c.b16 %v2067, %v2065
      %v2070 = vpack.c.b16 %v2068, %v2066
      %v2073 = vsel %vm464, %v2070, 0
      %2075 = vmatprep.subr.bf16.mxu0 %v2034
      %2076 = vmatpush1.bf16.msra.mxu0 %v2033
      %2077 = vmatprep.subr.bf16.mxu0 %v2036
      %2078 = vmatpush1.bf16.msra.mxu0 %v2035
      %2079 = vmatprep.subr.bf16.mxu0 %v2038
      %2080 = vmatpush1.bf16.msra.mxu0 %v2037
      %2081 = vmatprep.subr.bf16.mxu0 %v2040
      %2082 = vmatpush1.bf16.msra.mxu0 %v2039
      %2083 = vmatprep.subr.bf16.mxu0 %v2042
      %2084 = vmatpush1.bf16.msra.mxu0 %v2041
      %2085 = vmatprep.subr.bf16.mxu0 %v2044
      %2086 = vmatpush1.bf16.msra.mxu0 %v2043
      %2087 = vmatprep.subr.bf16.mxu0 %v2046
      %2088 = vmatpush1.bf16.msra.mxu0 %v2045
      %2089 = vmatprep.subr.bf16.mxu0 %v2048
      %2090 = vmatpush1.bf16.msra.mxu0 %v2047
      %2091 = vmatprep.subr.bf16.mxu0 %v2050
      %2092 = vmatpush1.bf16.msra.mxu0 %v2049
      %2093 = vmatprep.subr.bf16.mxu0 0
      %2094 = vmatpush1.bf16.msra.mxu0 0
      %2095 = vmatprep.subr.bf16.mxu0 0
      %2096 = vmatpush1.bf16.msra.mxu0 0
      %2097 = vmatprep.subr.bf16.mxu0 0
      %2098 = vmatpush1.bf16.msra.mxu0 0
      %2099 = vmatprep.subr.bf16.mxu0 0
      %2100 = vmatpush1.bf16.msra.mxu0 0
      %2101 = vmatprep.subr.bf16.mxu0 0
      %2102 = vmatpush1.bf16.msra.mxu0 0
      %2103 = vmatprep.subr.bf16.mxu0 0
      %2104 = vmatpush1.bf16.msra.mxu0 0
      %2105 = vmatprep.subr.bf16.mxu0 0
      %2106 = vmatpush1.bf16.msra.mxu0 0
      %2107 = vmatprep.mubr.bf16.mxu0 %v2073
      %2108 = vmatmul.mubr.bf16.gmra.mrb[0].mxu0 %v2069
      %v2109 = vpop.f32.mrb[0].mxu0
      %v2110 = vadd.f32 %v2056, %v2109
      %v2111 = vpop.f32.mrb[0].mxu0
      %v2112 = vadd.f32 %v2056, %v2111
      %v2113 = vpop.f32.mrb[0].mxu0
      %v2114 = vadd.f32 %v2061, %v2113
      %v2115 = vpop.f32.mrb[0].mxu0
      %v2116 = vadd.f32 %v2061, %v2115
      %2117 = vdwg.mxu0
      %2118 = vst [vmem:[%s413] sm:$0xff] %v2110
      %2119 = vst [vmem:[%s413 + $0x8] sm:$0xff] %v2112
      %2120 = vst [vmem:[%s413 + $0x10] sm:$0xff] %v2114
      %2121 = vst [vmem:[%s413 + $0x18] sm:$0xff] %v2116
      %p2122 = scmp.lt.s32.totalorder %s23, 1
      %s2123 = scalar_select %p2122, %s23, 1
      %s2124 = smul.addr %s2123, 4
      %s2125 = smul.addr %s2124, 8
      %s2126 = scalar_lea.vmem %s12, %s2125
      // Predicated region
      $region69: #{hbcnn_forward.1} parent=67 // pred_check
        %p2127 = pneg %p298
      $region70: #{hbcnn_forward.1} parent=67 // pred_check_branch
        %2129 = sbr.rel (%p2127) target = $region72
      $region71: #{hbcnn_forward.1} parent=67 // pred_region
        _
      $region72: #{hbcnn_forward.1} parent=67 // pred_fallthru
        _
    $region68: #{hbcnn_forward.1} parent=5 // pred_fallthru
      _
    %p2130 = scmp.le.s32.totalorder 2, %s18
    // Predicated region
    $region73: #{hbcnn_forward.1} parent=5 // pred_check
      %p2131 = pneg %p2130
    $region74: #{hbcnn_forward.1} parent=5 // pred_check_branch
      %2133 = sbr.rel (%p2131) target = $region76
    $region75: #{hbcnn_forward.1} parent=5 // pred_region
      %s2134 = ssub.s32 %s18, 2
      // Predicated region
      $region77: #{hbcnn_forward.1} parent=75 // pred_check
        %p2135 = pneg %p304
      $region78: #{hbcnn_forward.1} parent=75 // pred_check_branch
        %2137 = sbr.rel (%p2135) target = $region80
      $region79: #{hbcnn_forward.1} parent=75 // pred_region
        %p2138 = scmp.lt.s32.totalorder %s24, 1
        %s2139 = scalar_select %p2138, %s24, 1
        %s2140 = smul.addr %s2139, 4
        %s2141 = smul.addr %s2140, 8
        %s2142 = scalar_lea.vmem %s12, %s2141
      $region80: #{hbcnn_forward.1} parent=75 // pred_fallthru
        _
    $region76: #{hbcnn_forward.1} parent=5 // pred_fallthru
      _
  $region6: #{hbcnn_forward.1} parent=0 // loop_footer
    %s22 = sadd.s32 1, %s18
  $region7: #{hbcnn_forward.1} parent=0 // loop_footer_branch
    %17 = sbr.rel target = $region3
  $region8: #{hbcnn_forward.1} parent=0 // loop_exit
    _

</llo_original>
